<compile_context>
chip_gen: v7x
topology: tpu7x:2x2x1
jax: 0.10.0
libtpu: 0.0.40
codegen_flags: <defaults>
</compile_context>

<pallas_src>
import jax
import jax.numpy as jnp
from jax import lax
from jax.experimental import pallas as pl
from jax.experimental.pallas import tpu as pltpu

# ---------------- problem sizes (small, consistent with the module) ---------
N_NODES   = 16   # number of graph nodes
N_EDGES   = 32   # number of directed edges
IN_FEAT   = 8    # input_size
EDGE_FEAT = 8    # edge_size
HIDDEN    = 32   # hidden_size
N_QUBITS  = 8    # n_qubits
N_GRAPHS  = 2    # number of graphs in the batch
STEPS     = 3    # message passing steps
LN_EPS    = 1e-5
OUT_LANES = 128  # lane-dense kernel output; wrapper slices [:, :N_QUBITS]

assert IN_FEAT == EDGE_FEAT, "feat slab packing assumes equal x/edge widths"
assert N_NODES <= N_EDGES, "batch row is padded to N_EDGES lanes"

# Row offsets inside the packed weight slab (every block starts on a multiple
# of 8 -> static slices never cross an (8,128) sublane-tile boundary).
_R_WIX = 0                          # w_init_x : (IN_FEAT,  H)
_R_WIE = _R_WIX + IN_FEAT           # w_init_e : (EDGE_FEAT,H)
_R_WH1 = _R_WIE + EDGE_FEAT         # w_h1     : (H, H)
_R_WH2 = _R_WH1 + HIDDEN            # w_h2     : (H, H)
_R_WFX = _R_WH2 + HIDDEN            # w_fin_x  : (IN_FEAT, H)
_R_WFM = _R_WFX + IN_FEAT           # w_fin_m  : (H, H)
_R_B   = _R_WFM + HIDDEN            # bias rows: b_init,b_h1,b_h2,b_fin,ln_g,ln_b
W_ROWS = _R_B + 8                   # 2 zero pad rows -> 128 rows total

_COST = pl.CostEstimate(
    flops=2 * (N_NODES * IN_FEAT * HIDDEN                # x @ w_init_x
               + N_EDGES * N_NODES * HIDDEN              # a_src @ xz
               + N_EDGES * EDGE_FEAT * HIDDEN            # ea @ w_init_e
               + STEPS * (N_EDGES * N_EDGES * HIDDEN
                          + 2 * N_EDGES * HIDDEN * HIDDEN)
               + N_NODES * N_EDGES * HIDDEN              # a_srcT @ h
               + N_NODES * IN_FEAT * HIDDEN              # x @ w_fin_x
               + N_NODES * HIDDEN * HIDDEN               # m_node @ w_fin_m
               + N_GRAPHS * N_NODES * HIDDEN             # pool @ hn
               + N_GRAPHS * HIDDEN * OUT_LANES),         # pooled @ wq
    transcendentals=N_NODES,
    bytes_accessed=4 * ((N_NODES + N_EDGES) * IN_FEAT + 2 * N_EDGES
                        + 3 * N_EDGES + W_ROWS * HIDDEN
                        + HIDDEN * OUT_LANES + N_GRAPHS * OUT_LANES),
)


def _dot(a, b):
    return jnp.dot(a, b, preferred_element_type=jnp.float32)


def dmpnn_kernel(feat_ref, idxc_ref, idxr_ref, w_ref, wq_ref, out_ref):
    f32 = jnp.float32

    # ---- packed inputs: static row/lane slices (free) -----------------------
    x  = feat_ref[0:N_NODES, :]                            # (N, F)
    ea = feat_ref[N_NODES:N_NODES + N_EDGES, :]            # (E, Fe)

    src_col = idxc_ref[:, 0:1]                             # (E, 1) i32
    dst_col = idxc_ref[:, 1:2]                             # (E, 1) i32
    src_row = idxr_ref[0:1, :]                             # (1, E) i32
    dst_row = idxr_ref[1:2, :]                             # (1, E) i32
    bat_row = idxr_ref[2:3, 0:N_NODES]                     # (1, N) i32

    w_init_x = w_ref[_R_WIX:_R_WIX + IN_FEAT, :]
    w_init_e = w_ref[_R_WIE:_R_WIE + EDGE_FEAT, :]
    w_h1     = w_ref[_R_WH1:_R_WH1 + HIDDEN, :]
    w_h2     = w_ref[_R_WH2:_R_WH2 + HIDDEN, :]
    w_fin_x  = w_ref[_R_WFX:_R_WFX + IN_FEAT, :]
    w_fin_m  = w_ref[_R_WFM:_R_WFM + HIDDEN, :]
    b_init   = w_ref[_R_B + 0:_R_B + 1, :]                 # (1, H), broadcast adds
    b_h1     = w_ref[_R_B + 1:_R_B + 2, :]
    b_h2     = w_ref[_R_B + 2:_R_B + 3, :]
    b_fin    = w_ref[_R_B + 3:_R_B + 4, :]
    ln_g     = w_ref[_R_B + 4:_R_B + 5, :]
    ln_b     = w_ref[_R_B + 5:_R_B + 6, :]

    # ---- incidence / message masks built in-kernel (cheap VPU compares) -----
    a_src = (src_col ==
             lax.broadcasted_iota(jnp.int32, (N_EDGES, N_NODES), 1)).astype(f32)
    a_srcT = (src_row ==
              lax.broadcasted_iota(jnp.int32, (N_NODES, N_EDGES), 0)).astype(f32)
    re = lax.broadcasted_iota(jnp.int32, (N_EDGES, N_EDGES), 0)
    ce = lax.broadcasted_iota(jnp.int32, (N_EDGES, N_EDGES), 1)
    # P[e,e'] = 1 iff dst[e]==dst[e'] and e!=e'  (== a_dst @ a_dst.T - I)
    p = ((dst_col == dst_row) & (re != ce)).astype(f32)
    pool_oh = (bat_row ==
               lax.broadcasted_iota(jnp.int32, (N_GRAPHS, N_NODES), 0)).astype(f32)
    counts = jnp.maximum(jnp.sum(pool_oh, axis=1, keepdims=True), 1.0)   # (G, 1)

    # ---- h0 = relu(cat(x[src], edge_attr) @ W_init + b_init) ----------------
    # x[src] @ w_init_x == a_src @ (x @ w_init_x)   (exact 0/1 row selection)
    xz = _dot(x, w_init_x)                                               # (N, H)
    h0 = jnp.maximum(_dot(a_src, xz) + _dot(ea, w_init_e) + b_init, 0.0)  # (E, H)

    # ---- message passing (static unroll; STEPS is compile-time) -------------
    h = h0
    for _ in range(STEPS):
        m = _dot(p, h)                                                   # (E, H)
        t = jnp.maximum(_dot(m, w_h1) + b_h1, 0.0)
        t = _dot(t, w_h2) + b_h2
        h = jnp.maximum(h0 + t, 0.0)

    # ---- node readout + dense_final ------------------------------------------
    m_node = _dot(a_srcT, h)                                             # (N, H)
    hn = jnp.maximum(_dot(x, w_fin_x) + _dot(m_node, w_fin_m) + b_fin, 0.0)

    # LayerNorm (biased variance, eps inside sqrt), ReLU; dropout = identity.
    mu  = jnp.mean(hn, axis=-1, keepdims=True)
    var = jnp.mean((hn - mu) ** 2, axis=-1, keepdims=True)
    hn  = (hn - mu) * lax.rsqrt(var + LN_EPS) * ln_g + ln_b
    hn  = jnp.maximum(hn, 0.0)

    # global mean pool, then final dense (no bias); wq is lane-padded to 128.
    pooled = _dot(pool_oh, hn) / counts                                  # (G, H)
    out_ref[...] = _dot(pooled, wq_ref[...])                             # (G, 128)


def pack_params(params):
    """One-time packing of all weights/biases into a single row-stacked slab
    plus a lane-padded final-dense weight (done once per parameter set)."""
    f32 = jnp.float32
    rows = [params["w_init_x"], params["w_init_e"],
            params["w_h1"], params["w_h2"],
            params["w_fin_x"], params["w_fin_m"],
            params["b_init"], params["b_h1"], params["b_h2"], params["b_fin"],
            params["ln_gamma"], params["ln_beta"],
            jnp.zeros((2, HIDDEN), f32)]
    w_slab = jnp.concatenate([r.astype(f32) for r in rows], axis=0)
    assert w_slab.shape == (W_ROWS, HIDDEN)
    wq_pad = jnp.zeros((HIDDEN, OUT_LANES), f32).at[:, :N_QUBITS].set(
        params["w_q"].astype(f32))
    return w_slab, wq_pad


@jax.jit
def hqsc_dmpnn_forward(x, edge_attr, edge_index, batch, w_slab, wq_pad):
    """Jitted wrapper: only packs the dynamic graph data into 3 small slabs and
    calls the kernel (all graph-structure math happens inside the kernel)."""
    f32, i32 = jnp.float32, jnp.int32
    feat = jnp.concatenate([x.astype(f32), edge_attr.astype(f32)], axis=0)  # (N+E, F)
    src = edge_index[0].astype(i32)
    dst = edge_index[1].astype(i32)
    idxc = jnp.stack([src, dst], axis=1)                                    # (E, 2)
    bat_pad = jnp.zeros((N_EDGES,), i32).at[:N_NODES].set(batch.astype(i32))
    idxr = jnp.stack([src, dst, bat_pad], axis=0)                           # (3, E)

    vmem = pl.BlockSpec(memory_space=pltpu.MemorySpace.VMEM)
    out = pl.pallas_call(
        dmpnn_kernel,
        out_shape=jax.ShapeDtypeStruct((N_GRAPHS, OUT_LANES), f32),
        in_specs=[vmem] * 5,
        out_specs=vmem,
        compiler_params=pltpu.CompilerParams(vmem_limit_bytes=8 * 1024 * 1024),
        cost_estimate=_COST,
    )(feat, idxc, idxr, w_slab, wq_pad)
    return out[:, :N_QUBITS]
    # TODO(synk): type == 2 variant (concat of data.temp before final_dense) not wired in.


# ---------------- pure-JAX reference (mirrors the PyTorch forward) ----------
def reference_forward(x, edge_attr, edge_index, batch, params):
    f32 = jnp.float32
    x = x.astype(f32)
    ea = edge_attr.astype(f32)
    src, dst = edge_index[0], edge_index[1]
    n = x.shape[0]

    h0 = jnp.concatenate([x[src], ea], axis=1)
    w_i = jnp.concatenate([params["w_init_x"], params["w_init_e"]], axis=0)
    h0 = jax.nn.relu(h0 @ w_i + params["b_init"])
    h = h0
    for _ in range(STEPS):
        agg = jnp.zeros((n, HIDDEN), f32).at[dst].add(h)
        m = agg[dst] - h
        t = jax.nn.relu(m @ params["w_h1"] + params["b_h1"])
        t = t @ params["w_h2"] + params["b_h2"]
        h = jax.nn.relu(h0 + t)
    m_node = jnp.zeros((n, HIDDEN), f32).at[src].add(h)
    w_f = jnp.concatenate([params["w_fin_x"], params["w_fin_m"]], axis=0)
    hn = jax.nn.relu(jnp.concatenate([x, m_node], axis=1) @ w_f + params["b_fin"])
    mu = jnp.mean(hn, axis=-1, keepdims=True)
    var = jnp.mean((hn - mu) ** 2, axis=-1, keepdims=True)
    hn = (hn - mu) / jnp.sqrt(var + LN_EPS) * params["ln_gamma"] + params["ln_beta"]
    hn = jax.nn.relu(hn)
    oh = jax.nn.one_hot(batch, N_GRAPHS, dtype=f32).T
    pooled = (oh @ hn) / jnp.maximum(oh.sum(axis=1, keepdims=True), 1.0)
    return pooled @ params["w_q"]


def init_params(key):
    """Deterministic synthetic parameters.  PyTorch Linear weights are (out,in);
    here they are stored pre-transposed as (in, out)."""
    ks = jax.random.split(key, 12)
    f32 = jnp.float32

    def lin(k, fan_in, fan_out):
        bound = 1.0 / jnp.sqrt(fan_in)
        return jax.random.uniform(k, (fan_in, fan_out), f32, -bound, bound)

    def bias(k, fan_in, fan_out):
        bound = 1.0 / jnp.sqrt(fan_in)
        return jax.random.uniform(k, (1, fan_out), f32, -bound, bound)

    return {
        # dense_init : Linear(input+edge, hidden) split into x / edge slabs
        "w_init_x": lin(ks[0], IN_FEAT + EDGE_FEAT, HIDDEN)[:IN_FEAT],
        "w_init_e": lin(ks[0], IN_FEAT + EDGE_FEAT, HIDDEN)[IN_FEAT:],
        "b_init":   bias(ks[1], IN_FEAT + EDGE_FEAT, HIDDEN),
        # dense_hidden : Linear(H,H) -> ReLU -> Linear(H,H)
        "w_h1": lin(ks[2], HIDDEN, HIDDEN), "b_h1": bias(ks[3], HIDDEN, HIDDEN),
        "w_h2": lin(ks[4], HIDDEN, HIDDEN), "b_h2": bias(ks[5], HIDDEN, HIDDEN),
        # dense_final : Linear(input+hidden, hidden) split into x / m slabs
        "w_fin_x": lin(ks[6], IN_FEAT + HIDDEN, HIDDEN)[:IN_FEAT],
        "w_fin_m": lin(ks[6], IN_FEAT + HIDDEN, HIDDEN)[IN_FEAT:],
        "b_fin":   bias(ks[7], IN_FEAT + HIDDEN, HIDDEN),
        # LayerNorm(hidden)
        "ln_gamma": jnp.ones((1, HIDDEN), f32),
        "ln_beta":  jnp.zeros((1, HIDDEN), f32),
        # final_dense : Linear(hidden, n_qubits, bias=False)   (type == 1)
        "w_q": lin(ks[8], HIDDEN, N_QUBITS),
    }


if __name__ == "__main__":
    key = jax.random.PRNGKey(0)
    k_x, k_e, k_src, k_dst, k_p = jax.random.split(key, 5)

    x = jax.random.normal(k_x, (N_NODES, IN_FEAT), jnp.float32)
    edge_attr = jax.random.normal(k_e, (N_EDGES, EDGE_FEAT), jnp.float32)
    edge_index = jnp.stack([
        jax.random.randint(k_src, (N_EDGES,), 0, N_NODES),
        jax.random.randint(k_dst, (N_EDGES,), 0, N_NODES),
    ], axis=0)                                                   # (2, E)
    batch = jnp.concatenate([
        jnp.zeros((N_NODES // 2,), jnp.int32),
        jnp.ones((N_NODES - N_NODES // 2,), jnp.int32),
    ])

    params = init_params(k_p)
    w_slab, wq_pad = pack_params(params)     # one-time parameter packing

    out = hqsc_dmpnn_forward(x, edge_attr, edge_index, batch, w_slab, wq_pad)
    out = jax.block_until_ready(out)

    ref = reference_forward(x, edge_attr, edge_index, batch, params)
    assert out.shape == (N_GRAPHS, N_QUBITS)
    assert jnp.allclose(out, ref, atol=1e-4, rtol=1e-4), (out, ref)

    print("KERNEL_OK")
</pallas_src>

<mosaic_0001>
module attributes {stable_mosaic.version = 11 : i64} {
  func.func @dmpnn_kernel(%arg0: memref<48x8xf32, #tpu.memory_space<vmem>>, %arg1: memref<32x2xi32, #tpu.memory_space<vmem>>, %arg2: memref<3x32xi32, #tpu.memory_space<vmem>>, %arg3: memref<128x32xf32, #tpu.memory_space<vmem>>, %arg4: memref<32x128xf32, #tpu.memory_space<vmem>>, %arg5: memref<2x128xf32, #tpu.memory_space<vmem>>) attributes {dimension_semantics = [], scalar_prefetch = 0 : i64, scratch_operands = 0 : i64, tpu.core_type = #tpu.core_type<tc>} {
    %c0 = arith.constant 0 : index
    %c0_0 = arith.constant 0 : index
    %0 = vector.load %arg0[%c0, %c0_0] : memref<48x8xf32, #tpu.memory_space<vmem>>, vector<16x8xf32>
    %c16 = arith.constant 16 : index
    %c0_1 = arith.constant 0 : index
    %1 = vector.load %arg0[%c16, %c0_1] : memref<48x8xf32, #tpu.memory_space<vmem>>, vector<32x8xf32>
    %c0_2 = arith.constant 0 : index
    %c0_3 = arith.constant 0 : index
    %2 = vector.load %arg1[%c0_2, %c0_3] : memref<32x2xi32, #tpu.memory_space<vmem>>, vector<32x1xi32>
    %c0_4 = arith.constant 0 : index
    %c1 = arith.constant 1 : index
    %3 = vector.load %arg1[%c0_4, %c1] : memref<32x2xi32, #tpu.memory_space<vmem>>, vector<32x1xi32>
    %c0_5 = arith.constant 0 : index
    %c0_6 = arith.constant 0 : index
    %4 = vector.load %arg2[%c0_5, %c0_6] : memref<3x32xi32, #tpu.memory_space<vmem>>, vector<1x32xi32>
    %c1_7 = arith.constant 1 : index
    %c0_8 = arith.constant 0 : index
    %5 = vector.load %arg2[%c1_7, %c0_8] : memref<3x32xi32, #tpu.memory_space<vmem>>, vector<1x32xi32>
    %c2 = arith.constant 2 : index
    %c0_9 = arith.constant 0 : index
    %6 = vector.load %arg2[%c2, %c0_9] : memref<3x32xi32, #tpu.memory_space<vmem>>, vector<1x16xi32>
    %c0_10 = arith.constant 0 : index
    %c0_11 = arith.constant 0 : index
    %7 = vector.load %arg3[%c0_10, %c0_11] : memref<128x32xf32, #tpu.memory_space<vmem>>, vector<8x32xf32>
    %c8 = arith.constant 8 : index
    %c0_12 = arith.constant 0 : index
    %8 = vector.load %arg3[%c8, %c0_12] : memref<128x32xf32, #tpu.memory_space<vmem>>, vector<8x32xf32>
    %c16_13 = arith.constant 16 : index
    %c0_14 = arith.constant 0 : index
    %9 = vector.load %arg3[%c16_13, %c0_14] : memref<128x32xf32, #tpu.memory_space<vmem>>, vector<32x32xf32>
    %c48 = arith.constant 48 : index
    %c0_15 = arith.constant 0 : index
    %10 = vector.load %arg3[%c48, %c0_15] : memref<128x32xf32, #tpu.memory_space<vmem>>, vector<32x32xf32>
    %c80 = arith.constant 80 : index
    %c0_16 = arith.constant 0 : index
    %11 = vector.load %arg3[%c80, %c0_16] : memref<128x32xf32, #tpu.memory_space<vmem>>, vector<8x32xf32>
    %c88 = arith.constant 88 : index
    %c0_17 = arith.constant 0 : index
    %12 = vector.load %arg3[%c88, %c0_17] : memref<128x32xf32, #tpu.memory_space<vmem>>, vector<32x32xf32>
    %c120 = arith.constant 120 : index
    %c0_18 = arith.constant 0 : index
    %13 = vector.load %arg3[%c120, %c0_18] : memref<128x32xf32, #tpu.memory_space<vmem>>, vector<1x32xf32>
    %c121 = arith.constant 121 : index
    %c0_19 = arith.constant 0 : index
    %14 = vector.load %arg3[%c121, %c0_19] : memref<128x32xf32, #tpu.memory_space<vmem>>, vector<1x32xf32>
    %c122 = arith.constant 122 : index
    %c0_20 = arith.constant 0 : index
    %15 = vector.load %arg3[%c122, %c0_20] : memref<128x32xf32, #tpu.memory_space<vmem>>, vector<1x32xf32>
    %c123 = arith.constant 123 : index
    %c0_21 = arith.constant 0 : index
    %16 = vector.load %arg3[%c123, %c0_21] : memref<128x32xf32, #tpu.memory_space<vmem>>, vector<1x32xf32>
    %c124 = arith.constant 124 : index
    %c0_22 = arith.constant 0 : index
    %17 = vector.load %arg3[%c124, %c0_22] : memref<128x32xf32, #tpu.memory_space<vmem>>, vector<1x32xf32>
    %c125 = arith.constant 125 : index
    %c0_23 = arith.constant 0 : index
    %18 = vector.load %arg3[%c125, %c0_23] : memref<128x32xf32, #tpu.memory_space<vmem>>, vector<1x32xf32>
    %19 = tpu.iota {dimensions = array<i32: 1>} : vector<32x16xi32>
    %20 = vector.broadcast %2 : vector<32x1xi32> to vector<32x16xi32>
    %21 = arith.cmpi eq, %20, %19 : vector<32x16xi32>
    %22 = arith.extui %21 : vector<32x16xi1> to vector<32x16xi32>
    %23 = arith.sitofp %22 : vector<32x16xi32> to vector<32x16xf32>
    %24 = tpu.iota {dimensions = array<i32: 0>} : vector<16x32xi32>
    %25 = vector.broadcast %4 : vector<1x32xi32> to vector<16x32xi32>
    %26 = arith.cmpi eq, %25, %24 : vector<16x32xi32>
    %27 = arith.extui %26 : vector<16x32xi1> to vector<16x32xi32>
    %28 = arith.sitofp %27 : vector<16x32xi32> to vector<16x32xf32>
    %29 = tpu.iota {dimensions = array<i32: 0>} : vector<32x32xi32>
    %30 = tpu.iota {dimensions = array<i32: 1>} : vector<32x32xi32>
    %31 = vector.broadcast %3 : vector<32x1xi32> to vector<32x32xi32>
    %32 = vector.broadcast %5 : vector<1x32xi32> to vector<32x32xi32>
    %33 = arith.cmpi eq, %31, %32 : vector<32x32xi32>
    %34 = arith.cmpi ne, %29, %30 : vector<32x32xi32>
    %35 = arith.andi %33, %34 : vector<32x32xi1>
    %36 = arith.extui %35 : vector<32x32xi1> to vector<32x32xi32>
    %37 = arith.sitofp %36 : vector<32x32xi32> to vector<32x32xf32>
    %38 = tpu.iota {dimensions = array<i32: 0>} : vector<2x16xi32>
    %39 = vector.broadcast %6 : vector<1x16xi32> to vector<2x16xi32>
    %40 = arith.cmpi eq, %39, %38 : vector<2x16xi32>
    %41 = arith.extui %40 : vector<2x16xi1> to vector<2x16xi32>
    %42 = arith.sitofp %41 : vector<2x16xi32> to vector<2x16xf32>
    %cst = arith.constant dense<0.000000e+00> : vector<2xf32>
    %43 = vector.multi_reduction <add>, %42, %cst [1] : vector<2x16xf32> to vector<2xf32>
    %44 = vector.shape_cast %43 : vector<2xf32> to vector<2x1xf32>
    %cst_24 = arith.constant 1.000000e+00 : f32
    %45 = vector.broadcast %cst_24 : f32 to vector<2x1xf32>
    %46 = arith.maximumf %44, %45 : vector<2x1xf32>
    %cst_25 = arith.constant dense<0.000000e+00> : vector<16x32xf32>
    %47 = tpu.matmul %0, %7, %cst_25 {dimension_numbers = #tpu.dot_dimension_numbers<[1], [0], [0], [1], [0, 0, 1, 1], [], []>} : vector<16x8xf32>, vector<8x32xf32>, vector<16x32xf32> -> vector<16x32xf32>
    %cst_26 = arith.constant dense<0.000000e+00> : vector<32x32xf32>
    %48 = tpu.matmul %23, %47, %cst_26 {dimension_numbers = #tpu.dot_dimension_numbers<[1], [0], [0], [1], [0, 0, 1, 1], [], []>} : vector<32x16xf32>, vector<16x32xf32>, vector<32x32xf32> -> vector<32x32xf32>
    %cst_27 = arith.constant dense<0.000000e+00> : vector<32x32xf32>
    %49 = tpu.matmul %1, %8, %cst_27 {dimension_numbers = #tpu.dot_dimension_numbers<[1], [0], [0], [1], [0, 0, 1, 1], [], []>} : vector<32x8xf32>, vector<8x32xf32>, vector<32x32xf32> -> vector<32x32xf32>
    %50 = arith.addf %48, %49 : vector<32x32xf32>
    %51 = vector.broadcast %13 : vector<1x32xf32> to vector<32x32xf32>
    %52 = arith.addf %50, %51 : vector<32x32xf32>
    %cst_28 = arith.constant 0.000000e+00 : f32
    %53 = vector.broadcast %cst_28 : f32 to vector<32x32xf32>
    %54 = arith.maximumf %52, %53 : vector<32x32xf32>
    %cst_29 = arith.constant dense<0.000000e+00> : vector<32x32xf32>
    %55 = tpu.matmul %37, %54, %cst_29 {dimension_numbers = #tpu.dot_dimension_numbers<[1], [0], [0], [1], [0, 0, 1, 1], [], []>} : vector<32x32xf32>, vector<32x32xf32>, vector<32x32xf32> -> vector<32x32xf32>
    %cst_30 = arith.constant dense<0.000000e+00> : vector<32x32xf32>
    %56 = tpu.matmul %55, %9, %cst_30 {dimension_numbers = #tpu.dot_dimension_numbers<[1], [0], [0], [1], [0, 0, 1, 1], [], []>} : vector<32x32xf32>, vector<32x32xf32>, vector<32x32xf32> -> vector<32x32xf32>
    %57 = vector.broadcast %14 : vector<1x32xf32> to vector<32x32xf32>
    %58 = arith.addf %56, %57 : vector<32x32xf32>
    %cst_31 = arith.constant 0.000000e+00 : f32
    %59 = vector.broadcast %cst_31 : f32 to vector<32x32xf32>
    %60 = arith.maximumf %58, %59 : vector<32x32xf32>
    %cst_32 = arith.constant dense<0.000000e+00> : vector<32x32xf32>
    %61 = tpu.matmul %60, %10, %cst_32 {dimension_numbers = #tpu.dot_dimension_numbers<[1], [0], [0], [1], [0, 0, 1, 1], [], []>} : vector<32x32xf32>, vector<32x32xf32>, vector<32x32xf32> -> vector<32x32xf32>
    %62 = vector.broadcast %15 : vector<1x32xf32> to vector<32x32xf32>
    %63 = arith.addf %61, %62 : vector<32x32xf32>
    %64 = arith.addf %54, %63 : vector<32x32xf32>
    %cst_33 = arith.constant 0.000000e+00 : f32
    %65 = vector.broadcast %cst_33 : f32 to vector<32x32xf32>
    %66 = arith.maximumf %64, %65 : vector<32x32xf32>
    %cst_34 = arith.constant dense<0.000000e+00> : vector<32x32xf32>
    %67 = tpu.matmul %37, %66, %cst_34 {dimension_numbers = #tpu.dot_dimension_numbers<[1], [0], [0], [1], [0, 0, 1, 1], [], []>} : vector<32x32xf32>, vector<32x32xf32>, vector<32x32xf32> -> vector<32x32xf32>
    %cst_35 = arith.constant dense<0.000000e+00> : vector<32x32xf32>
    %68 = tpu.matmul %67, %9, %cst_35 {dimension_numbers = #tpu.dot_dimension_numbers<[1], [0], [0], [1], [0, 0, 1, 1], [], []>} : vector<32x32xf32>, vector<32x32xf32>, vector<32x32xf32> -> vector<32x32xf32>
    %69 = vector.broadcast %14 : vector<1x32xf32> to vector<32x32xf32>
    %70 = arith.addf %68, %69 : vector<32x32xf32>
    %cst_36 = arith.constant 0.000000e+00 : f32
    %71 = vector.broadcast %cst_36 : f32 to vector<32x32xf32>
    %72 = arith.maximumf %70, %71 : vector<32x32xf32>
    %cst_37 = arith.constant dense<0.000000e+00> : vector<32x32xf32>
    %73 = tpu.matmul %72, %10, %cst_37 {dimension_numbers = #tpu.dot_dimension_numbers<[1], [0], [0], [1], [0, 0, 1, 1], [], []>} : vector<32x32xf32>, vector<32x32xf32>, vector<32x32xf32> -> vector<32x32xf32>
    %74 = vector.broadcast %15 : vector<1x32xf32> to vector<32x32xf32>
    %75 = arith.addf %73, %74 : vector<32x32xf32>
    %76 = arith.addf %54, %75 : vector<32x32xf32>
    %cst_38 = arith.constant 0.000000e+00 : f32
    %77 = vector.broadcast %cst_38 : f32 to vector<32x32xf32>
    %78 = arith.maximumf %76, %77 : vector<32x32xf32>
    %cst_39 = arith.constant dense<0.000000e+00> : vector<32x32xf32>
    %79 = tpu.matmul %37, %78, %cst_39 {dimension_numbers = #tpu.dot_dimension_numbers<[1], [0], [0], [1], [0, 0, 1, 1], [], []>} : vector<32x32xf32>, vector<32x32xf32>, vector<32x32xf32> -> vector<32x32xf32>
    %cst_40 = arith.constant dense<0.000000e+00> : vector<32x32xf32>
    %80 = tpu.matmul %79, %9, %cst_40 {dimension_numbers = #tpu.dot_dimension_numbers<[1], [0], [0], [1], [0, 0, 1, 1], [], []>} : vector<32x32xf32>, vector<32x32xf32>, vector<32x32xf32> -> vector<32x32xf32>
    %81 = vector.broadcast %14 : vector<1x32xf32> to vector<32x32xf32>
    %82 = arith.addf %80, %81 : vector<32x32xf32>
    %cst_41 = arith.constant 0.000000e+00 : f32
    %83 = vector.broadcast %cst_41 : f32 to vector<32x32xf32>
    %84 = arith.maximumf %82, %83 : vector<32x32xf32>
    %cst_42 = arith.constant dense<0.000000e+00> : vector<32x32xf32>
    %85 = tpu.matmul %84, %10, %cst_42 {dimension_numbers = #tpu.dot_dimension_numbers<[1], [0], [0], [1], [0, 0, 1, 1], [], []>} : vector<32x32xf32>, vector<32x32xf32>, vector<32x32xf32> -> vector<32x32xf32>
    %86 = vector.broadcast %15 : vector<1x32xf32> to vector<32x32xf32>
    %87 = arith.addf %85, %86 : vector<32x32xf32>
    %88 = arith.addf %54, %87 : vector<32x32xf32>
    %cst_43 = arith.constant 0.000000e+00 : f32
    %89 = vector.broadcast %cst_43 : f32 to vector<32x32xf32>
    %90 = arith.maximumf %88, %89 : vector<32x32xf32>
    %cst_44 = arith.constant dense<0.000000e+00> : vector<16x32xf32>
    %91 = tpu.matmul %28, %90, %cst_44 {dimension_numbers = #tpu.dot_dimension_numbers<[1], [0], [0], [1], [0, 0, 1, 1], [], []>} : vector<16x32xf32>, vector<32x32xf32>, vector<16x32xf32> -> vector<16x32xf32>
    %cst_45 = arith.constant dense<0.000000e+00> : vector<16x32xf32>
    %92 = tpu.matmul %0, %11, %cst_45 {dimension_numbers = #tpu.dot_dimension_numbers<[1], [0], [0], [1], [0, 0, 1, 1], [], []>} : vector<16x8xf32>, vector<8x32xf32>, vector<16x32xf32> -> vector<16x32xf32>
    %cst_46 = arith.constant dense<0.000000e+00> : vector<16x32xf32>
    %93 = tpu.matmul %91, %12, %cst_46 {dimension_numbers = #tpu.dot_dimension_numbers<[1], [0], [0], [1], [0, 0, 1, 1], [], []>} : vector<16x32xf32>, vector<32x32xf32>, vector<16x32xf32> -> vector<16x32xf32>
    %94 = arith.addf %92, %93 : vector<16x32xf32>
    %95 = vector.broadcast %16 : vector<1x32xf32> to vector<16x32xf32>
    %96 = arith.addf %94, %95 : vector<16x32xf32>
    %cst_47 = arith.constant 0.000000e+00 : f32
    %97 = vector.broadcast %cst_47 : f32 to vector<16x32xf32>
    %98 = arith.maximumf %96, %97 : vector<16x32xf32>
    %cst_48 = arith.constant dense<0.000000e+00> : vector<16xf32>
    %99 = vector.multi_reduction <add>, %98, %cst_48 [1] : vector<16x32xf32> to vector<16xf32>
    %100 = vector.shape_cast %99 : vector<16xf32> to vector<16x1xf32>
    %cst_49 = arith.constant 3.200000e+01 : f32
    %101 = vector.broadcast %cst_49 : f32 to vector<16x1xf32>
    %102 = arith.divf %100, %101 : vector<16x1xf32>
    %103 = vector.broadcast %102 : vector<16x1xf32> to vector<16x32xf32>
    %104 = arith.subf %98, %103 : vector<16x32xf32>
    %105 = arith.mulf %104, %104 : vector<16x32xf32>
    %cst_50 = arith.constant dense<0.000000e+00> : vector<16xf32>
    %106 = vector.multi_reduction <add>, %105, %cst_50 [1] : vector<16x32xf32> to vector<16xf32>
    %107 = vector.shape_cast %106 : vector<16xf32> to vector<16x1xf32>
    %cst_51 = arith.constant 3.200000e+01 : f32
    %108 = vector.broadcast %cst_51 : f32 to vector<16x1xf32>
    %109 = arith.divf %107, %108 : vector<16x1xf32>
    %110 = vector.broadcast %102 : vector<16x1xf32> to vector<16x32xf32>
    %111 = arith.subf %98, %110 : vector<16x32xf32>
    %cst_52 = arith.constant 9.99999974E-6 : f32
    %112 = vector.broadcast %cst_52 : f32 to vector<16x1xf32>
    %113 = arith.addf %109, %112 : vector<16x1xf32>
    %114 = math.rsqrt %113 : vector<16x1xf32>
    %115 = vector.broadcast %114 : vector<16x1xf32> to vector<16x32xf32>
    %116 = arith.mulf %111, %115 : vector<16x32xf32>
    %117 = vector.broadcast %17 : vector<1x32xf32> to vector<16x32xf32>
    %118 = arith.mulf %116, %117 : vector<16x32xf32>
    %119 = vector.broadcast %18 : vector<1x32xf32> to vector<16x32xf32>
    %120 = arith.addf %118, %119 : vector<16x32xf32>
    %cst_53 = arith.constant 0.000000e+00 : f32
    %121 = vector.broadcast %cst_53 : f32 to vector<16x32xf32>
    %122 = arith.maximumf %120, %121 : vector<16x32xf32>
    %cst_54 = arith.constant dense<0.000000e+00> : vector<2x32xf32>
    %123 = tpu.matmul %42, %122, %cst_54 {dimension_numbers = #tpu.dot_dimension_numbers<[1], [0], [0], [1], [0, 0, 1, 1], [], []>} : vector<2x16xf32>, vector<16x32xf32>, vector<2x32xf32> -> vector<2x32xf32>
    %124 = vector.broadcast %46 : vector<2x1xf32> to vector<2x32xf32>
    %125 = arith.divf %123, %124 : vector<2x32xf32>
    %c0_55 = arith.constant 0 : index
    %c0_56 = arith.constant 0 : index
    %126 = vector.load %arg4[%c0_55, %c0_56] : memref<32x128xf32, #tpu.memory_space<vmem>>, vector<32x128xf32>
    %cst_57 = arith.constant dense<0.000000e+00> : vector<2x128xf32>
    %127 = tpu.matmul %125, %126, %cst_57 {dimension_numbers = #tpu.dot_dimension_numbers<[1], [0], [0], [1], [0, 0, 1, 1], [], []>} : vector<2x32xf32>, vector<32x128xf32>, vector<2x128xf32> -> vector<2x128xf32>
    %c0_58 = arith.constant 0 : index
    %c0_59 = arith.constant 0 : index
    %128 = vector.load %arg5[%c0_58, %c0_59] : memref<2x128xf32, #tpu.memory_space<vmem>>, vector<2x128xf32>
    tpu.vector_store %arg5[%c0_58, %c0_59], %127 {strides = array<i32>} : memref<2x128xf32, #tpu.memory_space<vmem>>, vector<2x128xf32>,
    return
  }
}

</mosaic_0001>

<llo_original>
// kernel: hqsc_dmpnn_forward.1
$region0: #{hqsc_dmpnn_forward.1}
  #allocation0 [shape = 'u32[]', space=smem, size = 0x4, offset = 0x4, fixed_abs, tag = 'smem constant byte address 0x4 - core index']
  #allocation1 [shape = 'u32[144,128]{1,0:T(1,128)}', space=vmem, size = 0x12000, scoped, tag = 'internal scratch']
  %s0 = inlined_call_operand.vmem [shape: f32[48,8], index: 0, kind: input, shape index: {}]
  %s1 = inlined_call_operand.vmem [shape: s32[32,2], index: 1, kind: input, shape index: {}]
  %s2 = inlined_call_operand.vmem [shape: s32[3,32], index: 2, kind: input, shape index: {}]
  %s3 = inlined_call_operand.vmem [shape: f32[128,32], index: 3, kind: input, shape index: {}]
  %s4 = inlined_call_operand.vmem [shape: f32[32,128], index: 4, kind: input, shape index: {}]
  %s5 = inlined_call_operand.hbm [shape: f32[2,128], index: 5, kind: output, shape index: {}]
  %s6 = sld [smem:[#allocation0]]
  $region30: #{hqsc_dmpnn_forward.1} parent=0
    _
  %s8 = ssub.s32 1, %s6
  %s9 = scalar_select 0, %s8, %s6
  $region1: #{hqsc_dmpnn_forward.1} parent=0
    #allocation2 [shape = 'u8[1024]{0}', space=vmem, size = 0x400, scoped, tag = 'output window, operand 0, single buffered']
    #allocation3 [shape = 's32[1]{0}', space=sflag, size = 0x4, scoped, tag = 'scoped memory for hqsc_dmpnn_forward.1']
    %10 = vsyncpa [#allocation3], 0
    // Predicated region
    $region2: #{hqsc_dmpnn_forward.1} parent=1 // pred_check
      _
    $region3: #{hqsc_dmpnn_forward.1} parent=1 // pred_check_branch
      %12 = sbr.rel (0) target = $region5
    $region4: #{hqsc_dmpnn_forward.1} parent=1 // pred_region
      _
    $region5: #{hqsc_dmpnn_forward.1} parent=1 // pred_fallthru
      _
    // Predicated region
    $region6: #{hqsc_dmpnn_forward.1} parent=1 // pred_check
      _
    $region7: #{hqsc_dmpnn_forward.1} parent=1 // pred_check_branch
      %14 = sbr.rel (0) target = $region9
    $region8: #{hqsc_dmpnn_forward.1} parent=1 // pred_region
      _
    $region9: #{hqsc_dmpnn_forward.1} parent=1 // pred_fallthru
      _
    // Predicated region
    $region10: #{hqsc_dmpnn_forward.1} parent=1 // pred_check
      _
    $region11: #{hqsc_dmpnn_forward.1} parent=1 // pred_check_branch
      %16 = sbr.rel (0) target = $region13
    $region12: #{hqsc_dmpnn_forward.1} parent=1 // pred_region
      _
    $region13: #{hqsc_dmpnn_forward.1} parent=1 // pred_fallthru
      _
    // Predicated region
    $region14: #{hqsc_dmpnn_forward.1} parent=1 // pred_check
      _
    $region15: #{hqsc_dmpnn_forward.1} parent=1 // pred_check_branch
      %18 = sbr.rel (0) target = $region17
    $region16: #{hqsc_dmpnn_forward.1} parent=1 // pred_region
      _
    $region17: #{hqsc_dmpnn_forward.1} parent=1 // pred_fallthru
      _
    // Predicated region
    $region18: #{hqsc_dmpnn_forward.1} parent=1 // pred_check
      _
    $region19: #{hqsc_dmpnn_forward.1} parent=1 // pred_check_branch
      %20 = sbr.rel (0) target = $region21
    $region20: #{hqsc_dmpnn_forward.1} parent=1 // pred_region
      _
    $region21: #{hqsc_dmpnn_forward.1} parent=1 // pred_fallthru
      _
    %v21 = vld [vmem:[%s0] sm:$0xff]
    %v22 = vld [vmem:[%s0 + $0x8] sm:$0xff]
    %v23 = vld [vmem:[%s0 + $0x10] sm:$0xff]
    %v24 = vld [vmem:[%s0 + $0x18] sm:$0xff]
    %v25 = vld [vmem:[%s0 + $0x20] sm:$0xff]
    %v26 = vld [vmem:[%s0 + $0x28] sm:$0xff]
    %v27 = vld [vmem:[%s1] sm:$0xff]
    %v28 = vld [vmem:[%s1 + $0x8] sm:$0xff]
    %v29 = vld [vmem:[%s1 + $0x10] sm:$0xff]
    %v30 = vld [vmem:[%s1 + $0x18] sm:$0xff]
    %v31 = vld [vmem:[%s2] sm:$0x1]
    %v32 = vld [vmem:[%s2 + $0x1] sm:$0x1]
    %v33 = vld [vmem:[%s2 + $0x2] sm:$0x1]
    %v34 = vld [vmem:[%s3] sm:$0xff]
    %v35 = vld [vmem:[%s3 + $0x8] sm:$0xff]
    %v36 = vld [vmem:[%s3 + $0x10] sm:$0xff]
    %v37 = vld [vmem:[%s3 + $0x18] sm:$0xff]
    %v38 = vld [vmem:[%s3 + $0x20] sm:$0xff]
    %v39 = vld [vmem:[%s3 + $0x28] sm:$0xff]
    %v40 = vld [vmem:[%s3 + $0x30] sm:$0xff]
    %v41 = vld [vmem:[%s3 + $0x38] sm:$0xff]
    %v42 = vld [vmem:[%s3 + $0x40] sm:$0xff]
    %v43 = vld [vmem:[%s3 + $0x48] sm:$0xff]
    %v44 = vld [vmem:[%s3 + $0x50] sm:$0xff]
    %v45 = vld [vmem:[%s3 + $0x58] sm:$0xff]
    %v46 = vld [vmem:[%s3 + $0x60] sm:$0xff]
    %v47 = vld [vmem:[%s3 + $0x68] sm:$0xff]
    %v48 = vld [vmem:[%s3 + $0x70] sm:$0xff]
    %v49 = vld [vmem:[%s3 + $0x78] sm:$0x1]
    %v50 = vld [vmem:[%s3 + $0x79] sm:$0x1]
    %v51 = vld [vmem:[%s3 + $0x7a] sm:$0x1]
    %v52 = vld [vmem:[%s3 + $0x7b] sm:$0x1]
    %v53 = vld [vmem:[%s3 + $0x7c] sm:$0x1]
    %v54 = vld [vmem:[%s3 + $0x7d] sm:$0x1]
    %v55 = vlaneseq
    %v56 = vand.u32 %v55, 127
    %57 = vset.pattern.permute.xlu0 0
    %58 = vperm.xlu0 %57, %v27
    %v59 = vpop.permute.xlu0 %58
    %60 = vset.pattern.permute.xlu0 0
    %61 = vperm.xlu0 %60, %v28
    %v62 = vpop.permute.xlu0 %61
    %63 = vset.pattern.permute.xlu0 0
    %64 = vperm.xlu0 %63, %v29
    %v65 = vpop.permute.xlu0 %64
    %66 = vset.pattern.permute.xlu0 0
    %67 = vperm.xlu0 %66, %v30
    %v68 = vpop.permute.xlu0 %67
    %vm69 = vcmp.eq.s32.totalorder %v59, %v56
    %vm70 = vcmp.eq.s32.totalorder %v62, %v56
    %vm71 = vcmp.eq.s32.totalorder %v65, %v56
    %vm72 = vcmp.eq.s32.totalorder %v68, %v56
    %v73 = vsel %vm69, 1, 0
    %v74 = vsel %vm70, 1, 0
    %v75 = vsel %vm71, 1, 0
    %v76 = vsel %vm72, 1, 0
    %v77 = vcvt.s32.f32 %v73
    %v78 = vcvt.s32.f32 %v74
    %v79 = vcvt.s32.f32 %v75
    %v80 = vcvt.s32.f32 %v76
    %v81 = vlaneseq
    %v82 = vshrl.u32 %v81, 7
    %v83 = vadd.s32 %v82, 8
    %v84 = vlaneseq
    %v85 = vshrl.u32 %v84, 7
    %v86 = vsub.s32 0, %v85
    %v87 = vrot.slane %v31, %v86
    %vm88 = vcmp.eq.s32.totalorder %v87, %v82
    %vm89 = vcmp.eq.s32.totalorder %v87, %v83
    %v90 = vsel %vm88, 1, 0
    %v91 = vsel %vm89, 1, 0
    %v92 = vcvt.s32.f32 %v90
    %v93 = vcvt.s32.f32 %v91
    %v94 = vadd.s32 %v82, 16
    %v95 = vadd.s32 %v82, 24
    %96 = vset.pattern.permute.xlu0 1
    %97 = vperm.xlu0 %96, %v27
    %v98 = vpop.permute.xlu0 %97
    %99 = vset.pattern.permute.xlu0 1
    %100 = vperm.xlu0 %99, %v28
    %v101 = vpop.permute.xlu0 %100
    %102 = vset.pattern.permute.xlu0 1
    %103 = vperm.xlu0 %102, %v29
    %v104 = vpop.permute.xlu0 %103
    %105 = vset.pattern.permute.xlu0 1
    %106 = vperm.xlu0 %105, %v30
    %v107 = vpop.permute.xlu0 %106
    %v108 = vlaneseq
    %v109 = vshrl.u32 %v108, 7
    %v110 = vsub.s32 0, %v109
    %v111 = vrot.slane %v32, %v110
    %vm112 = vcmp.eq.s32.totalorder %v98, %v111
    %vm113 = vcmp.eq.s32.totalorder %v101, %v111
    %vm114 = vcmp.eq.s32.totalorder %v104, %v111
    %vm115 = vcmp.eq.s32.totalorder %v107, %v111
    %vm116 = vcmp.ne.s32.totalorder %v82, %v56
    %vm117 = vcmp.ne.s32.totalorder %v83, %v56
    %vm118 = vcmp.ne.s32.totalorder %v94, %v56
    %vm119 = vcmp.ne.s32.totalorder %v95, %v56
    %vm120 = vmand %vm112, %vm116
    %vm121 = vmand %vm113, %vm117
    %vm122 = vmand %vm114, %vm118
    %vm123 = vmand %vm115, %vm119
    %v124 = vsel %vm120, 1, 0
    %v125 = vsel %vm121, 1, 0
    %v126 = vsel %vm122, 1, 0
    %v127 = vsel %vm123, 1, 0
    %v128 = vcvt.s32.f32 %v124
    %v129 = vcvt.s32.f32 %v125
    %v130 = vcvt.s32.f32 %v126
    %v131 = vcvt.s32.f32 %v127
    %v132 = vlaneseq
    %v133 = vshrl.u32 %v132, 7
    %v134 = vsub.s32 0, %v133
    %v135 = vrot.slane %v33, %v134
    %vm136 = vcmp.eq.s32.totalorder %v135, %v82
    %v137 = vsel %vm136, 1, 0
    %v138 = vcvt.s32.f32 %v137
    %vm139 = vcmask 123904
    %v140 = vsel %vm139, %v138, 0.0
    %141 = vadd.xlane.f32.xlu0 %v140
    %v142 = vpop.xlane.xlu0 %141
    %v143 = vmax.f32 %v142, 1.0
    %vm144 = vcmask 64512
    %v146 = vsel %vm144, %v21, 0
    %v149 = vsel %vm144, %v22, 0
    %151 = vmatprep.subr.mxu0 0.0
    %152 = vmatpush1.msra.mxu0 %v34
    %153 = vmatprep.subr.mxu0 0.0
    %154 = vmatpush1.msra.mxu0 0.0
    %155 = vmatprep.subr.mxu0 0.0
    %156 = vmatpush1.msra.mxu0 0.0
    %157 = vmatprep.subr.mxu0 0.0
    %158 = vmatpush1.msra.mxu0 0.0
    %159 = vmatprep.subr.mxu0 0.0
    %160 = vmatpush1.msra.mxu0 0.0
    %161 = vmatprep.subr.mxu0 0.0
    %162 = vmatpush1.msra.mxu0 0.0
    %163 = vmatprep.subr.mxu0 0.0
    %164 = vmatpush1.msra.mxu0 0.0
    %165 = vmatprep.subr.mxu0 0.0
    %166 = vmatpush1.msra.mxu0 0.0
    %167 = vmatprep.subr.mxu0 0.0
    %168 = vmatpush1.msra.mxu0 0.0
    %169 = vmatprep.subr.mxu0 0.0
    %170 = vmatpush1.msra.mxu0 0.0
    %171 = vmatprep.subr.mxu0 0.0
    %172 = vmatpush1.msra.mxu0 0.0
    %173 = vmatprep.subr.mxu0 0.0
    %174 = vmatpush1.msra.mxu0 0.0
    %175 = vmatprep.subr.mxu0 0.0
    %176 = vmatpush1.msra.mxu0 0.0
    %177 = vmatprep.subr.mxu0 0.0
    %178 = vmatpush1.msra.mxu0 0.0
    %179 = vmatprep.subr.mxu0 0.0
    %180 = vmatpush1.msra.mxu0 0.0
    %181 = vmatprep.subr.mxu0 0.0
    %182 = vmatpush1.msra.mxu0 0.0
    %183 = vmatprep.subr.mxu0 0.0
    %184 = vmatpush1.msra.mxu0 0.0
    %185 = vmatprep.subr.mxu0 0.0
    %186 = vmatpush1.msra.mxu0 0.0
    %187 = vmatprep.subr.mxu0 0.0
    %188 = vmatpush1.msra.mxu0 0.0
    %189 = vmatprep.subr.mxu0 0.0
    %190 = vmatpush1.msra.mxu0 0.0
    %191 = vmatprep.subr.mxu0 0.0
    %192 = vmatpush1.msra.mxu0 0.0
    %193 = vmatprep.subr.mxu0 0.0
    %194 = vmatpush1.msra.mxu0 0.0
    %195 = vmatprep.subr.mxu0 0.0
    %196 = vmatpush1.msra.mxu0 0.0
    %197 = vmatprep.subr.mxu0 0.0
    %198 = vmatpush1.msra.mxu0 0.0
    %199 = vmatprep.subr.mxu0 0.0
    %200 = vmatpush1.msra.mxu0 0.0
    %201 = vmatprep.subr.mxu0 0.0
    %202 = vmatpush1.msra.mxu0 0.0
    %203 = vmatprep.subr.mxu0 0.0
    %204 = vmatpush1.msra.mxu0 0.0
    %205 = vmatprep.subr.mxu0 0.0
    %206 = vmatpush1.msra.mxu0 0.0
    %207 = vmatprep.subr.mxu0 0.0
    %208 = vmatpush1.msra.mxu0 0.0
    %209 = vmatprep.subr.mxu0 0.0
    %210 = vmatpush1.msra.mxu0 0.0
    %211 = vmatprep.subr.mxu0 0.0
    %212 = vmatpush1.msra.mxu0 0.0
    %213 = vmatprep.subr.mxu0 0.0
    %214 = vmatpush1.msra.mxu0 0.0
    %215 = vmatprep.mubr.f32.mxu0 0.0
    %216 = vmatmul.mubr.f32.gmra.mrb[0].mxu0 %v146
    %v217 = vpop.f32.mrb[0].mxu0
    %v218 = vadd.f32 0.0, %v217
    %v219 = vpop.f32.mrb[0].mxu0
    %220 = vmatprep.mubr.f32.mxu0 0.0
    %221 = vmatmul.mubr.f32.gmra.mrb[0].mxu0 %v149
    %v222 = vpop.f32.mrb[0].mxu0
    %v223 = vadd.f32 0.0, %v222
    %v224 = vpop.f32.mrb[0].mxu0
    %225 = vdwg.mxu0
    %v227 = vsel %vm144, %v23, 0
    %v230 = vsel %vm144, %v24, 0
    %v233 = vsel %vm144, %v25, 0
    %v236 = vsel %vm144, %v26, 0
    %238 = vmatprep.subr.mxu0 0.0
    %239 = vmatpush1.msra.mxu0 %v35
    %240 = vmatprep.subr.mxu0 0.0
    %241 = vmatpush1.msra.mxu0 0.0
    %242 = vmatprep.subr.mxu0 0.0
    %243 = vmatpush1.msra.mxu0 0.0
    %244 = vmatprep.subr.mxu0 0.0
    %245 = vmatpush1.msra.mxu0 0.0
    %246 = vmatprep.subr.mxu0 0.0
    %247 = vmatpush1.msra.mxu0 0.0
    %248 = vmatprep.subr.mxu0 0.0
    %249 = vmatpush1.msra.mxu0 0.0
    %250 = vmatprep.subr.mxu0 0.0
    %251 = vmatpush1.msra.mxu0 0.0
    %252 = vmatprep.subr.mxu0 0.0
    %253 = vmatpush1.msra.mxu0 0.0
    %254 = vmatprep.subr.mxu0 0.0
    %255 = vmatpush1.msra.mxu0 0.0
    %256 = vmatprep.subr.mxu0 0.0
    %257 = vmatpush1.msra.mxu0 0.0
    %258 = vmatprep.subr.mxu0 0.0
    %259 = vmatpush1.msra.mxu0 0.0
    %260 = vmatprep.subr.mxu0 0.0
    %261 = vmatpush1.msra.mxu0 0.0
    %262 = vmatprep.subr.mxu0 0.0
    %263 = vmatpush1.msra.mxu0 0.0
    %264 = vmatprep.subr.mxu0 0.0
    %265 = vmatpush1.msra.mxu0 0.0
    %266 = vmatprep.subr.mxu0 0.0
    %267 = vmatpush1.msra.mxu0 0.0
    %268 = vmatprep.subr.mxu0 0.0
    %269 = vmatpush1.msra.mxu0 0.0
    %270 = vmatprep.subr.mxu0 0.0
    %271 = vmatpush1.msra.mxu0 0.0
    %272 = vmatprep.subr.mxu0 0.0
    %273 = vmatpush1.msra.mxu0 0.0
    %274 = vmatprep.subr.mxu0 0.0
    %275 = vmatpush1.msra.mxu0 0.0
    %276 = vmatprep.subr.mxu0 0.0
    %277 = vmatpush1.msra.mxu0 0.0
    %278 = vmatprep.subr.mxu0 0.0
    %279 = vmatpush1.msra.mxu0 0.0
    %280 = vmatprep.subr.mxu0 0.0
    %281 = vmatpush1.msra.mxu0 0.0
    %282 = vmatprep.subr.mxu0 0.0
    %283 = vmatpush1.msra.mxu0 0.0
    %284 = vmatprep.subr.mxu0 0.0
    %285 = vmatpush1.msra.mxu0 0.0
    %286 = vmatprep.subr.mxu0 0.0
    %287 = vmatpush1.msra.mxu0 0.0
    %288 = vmatprep.subr.mxu0 0.0
    %289 = vmatpush1.msra.mxu0 0.0
    %290 = vmatprep.subr.mxu0 0.0
    %291 = vmatpush1.msra.mxu0 0.0
    %292 = vmatprep.subr.mxu0 0.0
    %293 = vmatpush1.msra.mxu0 0.0
    %294 = vmatprep.subr.mxu0 0.0
    %295 = vmatpush1.msra.mxu0 0.0
    %296 = vmatprep.subr.mxu0 0.0
    %297 = vmatpush1.msra.mxu0 0.0
    %298 = vmatprep.subr.mxu0 0.0
    %299 = vmatpush1.msra.mxu0 0.0
    %300 = vmatprep.subr.mxu0 0.0
    %301 = vmatpush1.msra.mxu0 0.0
    %302 = vmatprep.mubr.f32.mxu0 0.0
    %303 = vmatmul.mubr.f32.gmra.mrb[0].mxu0 %v227
    %v304 = vpop.f32.mrb[0].mxu0
    %v305 = vadd.f32 0.0, %v304
    %v306 = vpop.f32.mrb[0].mxu0
    %307 = vmatprep.mubr.f32.mxu0 0.0
    %308 = vmatmul.mubr.f32.gmra.mrb[0].mxu0 %v230
    %v309 = vpop.f32.mrb[0].mxu0
    %v310 = vadd.f32 0.0, %v309
    %v311 = vpop.f32.mrb[0].mxu0
    %312 = vmatprep.mubr.f32.mxu0 0.0
    %313 = vmatmul.mubr.f32.gmra.mrb[0].mxu0 %v233
    %v314 = vpop.f32.mrb[0].mxu0
    %v315 = vadd.f32 0.0, %v314
    %v316 = vpop.f32.mrb[0].mxu0
    %317 = vmatprep.mubr.f32.mxu0 0.0
    %318 = vmatmul.mubr.f32.gmra.mrb[0].mxu0 %v236
    %v319 = vpop.f32.mrb[0].mxu0
    %v320 = vadd.f32 0.0, %v319
    %v321 = vpop.f32.mrb[0].mxu0
    %322 = vdwg.mxu0
    %vm323 = vcmask 130048
    %v325 = vsel %vm323, %v77, 0
    %v328 = vsel %vm323, %v78, 0
    %v331 = vsel %vm323, %v79, 0
    %v334 = vsel %vm323, %v80, 0
    %336 = vmatprep.subr.mxu0 0.0
    %337 = vmatpush1.msra.mxu0 %v218
    %338 = vmatprep.subr.mxu0 0.0
    %339 = vmatpush1.msra.mxu0 %v223
    %340 = vmatprep.subr.mxu0 0.0
    %341 = vmatpush1.msra.mxu0 0.0
    %342 = vmatprep.subr.mxu0 0.0
    %343 = vmatpush1.msra.mxu0 0.0
    %344 = vmatprep.subr.mxu0 0.0
    %345 = vmatpush1.msra.mxu0 0.0
    %346 = vmatprep.subr.mxu0 0.0
    %347 = vmatpush1.msra.mxu0 0.0
    %348 = vmatprep.subr.mxu0 0.0
    %349 = vmatpush1.msra.mxu0 0.0
    %350 = vmatprep.subr.mxu0 0.0
    %351 = vmatpush1.msra.mxu0 0.0
    %352 = vmatprep.subr.mxu0 0.0
    %353 = vmatpush1.msra.mxu0 0.0
    %354 = vmatprep.subr.mxu0 0.0
    %355 = vmatpush1.msra.mxu0 0.0
    %356 = vmatprep.subr.mxu0 0.0
    %357 = vmatpush1.msra.mxu0 0.0
    %358 = vmatprep.subr.mxu0 0.0
    %359 = vmatpush1.msra.mxu0 0.0
    %360 = vmatprep.subr.mxu0 0.0
    %361 = vmatpush1.msra.mxu0 0.0
    %362 = vmatprep.subr.mxu0 0.0
    %363 = vmatpush1.msra.mxu0 0.0
    %364 = vmatprep.subr.mxu0 0.0
    %365 = vmatpush1.msra.mxu0 0.0
    %366 = vmatprep.subr.mxu0 0.0
    %367 = vmatpush1.msra.mxu0 0.0
    %368 = vmatprep.subr.mxu0 0.0
    %369 = vmatpush1.msra.mxu0 0.0
    %370 = vmatprep.subr.mxu0 0.0
    %371 = vmatpush1.msra.mxu0 0.0
    %372 = vmatprep.subr.mxu0 0.0
    %373 = vmatpush1.msra.mxu0 0.0
    %374 = vmatprep.subr.mxu0 0.0
    %375 = vmatpush1.msra.mxu0 0.0
    %376 = vmatprep.subr.mxu0 0.0
    %377 = vmatpush1.msra.mxu0 0.0
    %378 = vmatprep.subr.mxu0 0.0
    %379 = vmatpush1.msra.mxu0 0.0
    %380 = vmatprep.subr.mxu0 0.0
    %381 = vmatpush1.msra.mxu0 0.0
    %382 = vmatprep.subr.mxu0 0.0
    %383 = vmatpush1.msra.mxu0 0.0
    %384 = vmatprep.subr.mxu0 0.0
    %385 = vmatpush1.msra.mxu0 0.0
    %386 = vmatprep.subr.mxu0 0.0
    %387 = vmatpush1.msra.mxu0 0.0
    %388 = vmatprep.subr.mxu0 0.0
    %389 = vmatpush1.msra.mxu0 0.0
    %390 = vmatprep.subr.mxu0 0.0
    %391 = vmatpush1.msra.mxu0 0.0
    %392 = vmatprep.subr.mxu0 0.0
    %393 = vmatpush1.msra.mxu0 0.0
    %394 = vmatprep.subr.mxu0 0.0
    %395 = vmatpush1.msra.mxu0 0.0
    %396 = vmatprep.subr.mxu0 0.0
    %397 = vmatpush1.msra.mxu0 0.0
    %398 = vmatprep.subr.mxu0 0.0
    %399 = vmatpush1.msra.mxu0 0.0
    %400 = vmatprep.mubr.f32.mxu0 0.0
    %401 = vmatmul.mubr.f32.gmra.mrb[0].mxu0 %v325
    %v402 = vpop.f32.mrb[0].mxu0
    %v403 = vadd.f32 %v305, %v402
    %v404 = vpop.f32.mrb[0].mxu0
    %405 = vmatprep.mubr.f32.mxu0 0.0
    %406 = vmatmul.mubr.f32.gmra.mrb[0].mxu0 %v328
    %v407 = vpop.f32.mrb[0].mxu0
    %v408 = vadd.f32 %v310, %v407
    %v409 = vpop.f32.mrb[0].mxu0
    %410 = vmatprep.mubr.f32.mxu0 0.0
    %411 = vmatmul.mubr.f32.gmra.mrb[0].mxu0 %v331
    %v412 = vpop.f32.mrb[0].mxu0
    %v413 = vadd.f32 %v315, %v412
    %v414 = vpop.f32.mrb[0].mxu0
    %415 = vmatprep.mubr.f32.mxu0 0.0
    %416 = vmatmul.mubr.f32.gmra.mrb[0].mxu0 %v334
    %v417 = vpop.f32.mrb[0].mxu0
    %v418 = vadd.f32 %v320, %v417
    %v419 = vpop.f32.mrb[0].mxu0
    %420 = vdwg.mxu0
    %v421 = vlaneseq
    %v422 = vshrl.u32 %v421, 7
    %v423 = vsub.s32 0, %v422
    %v424 = vrot.slane %v49, %v423
    %v425 = vadd.f32 %v403, %v424
    %v426 = vadd.f32 %v408, %v424
    %v427 = vadd.f32 %v413, %v424
    %v428 = vadd.f32 %v418, %v424
    %v429 = vmax.f32 %v425, 0.0
    %v430 = vmax.f32 %v426, 0.0
    %v431 = vmax.f32 %v427, 0.0
    %v432 = vmax.f32 %v428, 0.0
    %vm433 = vcmask 261120
    %v435 = vsel %vm433, %v128, 0
    %v438 = vsel %vm433, %v129, 0
    %v441 = vsel %vm433, %v130, 0
    %v444 = vsel %vm433, %v131, 0
    %446 = vmatprep.subr.mxu0 0.0
    %447 = vmatpush1.msra.mxu0 %v429
    %448 = vmatprep.subr.mxu0 0.0
    %449 = vmatpush1.msra.mxu0 %v430
    %450 = vmatprep.subr.mxu0 0.0
    %451 = vmatpush1.msra.mxu0 %v431
    %452 = vmatprep.subr.mxu0 0.0
    %453 = vmatpush1.msra.mxu0 %v432
    %454 = vmatprep.subr.mxu0 0.0
    %455 = vmatpush1.msra.mxu0 0.0
    %456 = vmatprep.subr.mxu0 0.0
    %457 = vmatpush1.msra.mxu0 0.0
    %458 = vmatprep.subr.mxu0 0.0
    %459 = vmatpush1.msra.mxu0 0.0
    %460 = vmatprep.subr.mxu0 0.0
    %461 = vmatpush1.msra.mxu0 0.0
    %462 = vmatprep.subr.mxu0 0.0
    %463 = vmatpush1.msra.mxu0 0.0
    %464 = vmatprep.subr.mxu0 0.0
    %465 = vmatpush1.msra.mxu0 0.0
    %466 = vmatprep.subr.mxu0 0.0
    %467 = vmatpush1.msra.mxu0 0.0
    %468 = vmatprep.subr.mxu0 0.0
    %469 = vmatpush1.msra.mxu0 0.0
    %470 = vmatprep.subr.mxu0 0.0
    %471 = vmatpush1.msra.mxu0 0.0
    %472 = vmatprep.subr.mxu0 0.0
    %473 = vmatpush1.msra.mxu0 0.0
    %474 = vmatprep.subr.mxu0 0.0
    %475 = vmatpush1.msra.mxu0 0.0
    %476 = vmatprep.subr.mxu0 0.0
    %477 = vmatpush1.msra.mxu0 0.0
    %478 = vmatprep.subr.mxu0 0.0
    %479 = vmatpush1.msra.mxu0 0.0
    %480 = vmatprep.subr.mxu0 0.0
    %481 = vmatpush1.msra.mxu0 0.0
    %482 = vmatprep.subr.mxu0 0.0
    %483 = vmatpush1.msra.mxu0 0.0
    %484 = vmatprep.subr.mxu0 0.0
    %485 = vmatpush1.msra.mxu0 0.0
    %486 = vmatprep.subr.mxu0 0.0
    %487 = vmatpush1.msra.mxu0 0.0
    %488 = vmatprep.subr.mxu0 0.0
    %489 = vmatpush1.msra.mxu0 0.0
    %490 = vmatprep.subr.mxu0 0.0
    %491 = vmatpush1.msra.mxu0 0.0
    %492 = vmatprep.subr.mxu0 0.0
    %493 = vmatpush1.msra.mxu0 0.0
    %494 = vmatprep.subr.mxu0 0.0
    %495 = vmatpush1.msra.mxu0 0.0
    %496 = vmatprep.subr.mxu0 0.0
    %497 = vmatpush1.msra.mxu0 0.0
    %498 = vmatprep.subr.mxu0 0.0
    %499 = vmatpush1.msra.mxu0 0.0
    %500 = vmatprep.subr.mxu0 0.0
    %501 = vmatpush1.msra.mxu0 0.0
    %502 = vmatprep.subr.mxu0 0.0
    %503 = vmatpush1.msra.mxu0 0.0
    %504 = vmatprep.subr.mxu0 0.0
    %505 = vmatpush1.msra.mxu0 0.0
    %506 = vmatprep.subr.mxu0 0.0
    %507 = vmatpush1.msra.mxu0 0.0
    %508 = vmatprep.subr.mxu0 0.0
    %509 = vmatpush1.msra.mxu0 0.0
    %510 = vmatprep.mubr.f32.mxu0 0.0
    %511 = vmatmul.mubr.f32.gmra.mrb[0].mxu0 %v435
    %v512 = vpop.f32.mrb[0].mxu0
    %v513 = vadd.f32 0.0, %v512
    %v514 = vpop.f32.mrb[0].mxu0
    %515 = vmatprep.mubr.f32.mxu0 0.0
    %516 = vmatmul.mubr.f32.gmra.mrb[0].mxu0 %v438
    %v517 = vpop.f32.mrb[0].mxu0
    %v518 = vadd.f32 0.0, %v517
    %v519 = vpop.f32.mrb[0].mxu0
    %520 = vmatprep.mubr.f32.mxu0 0.0
    %521 = vmatmul.mubr.f32.gmra.mrb[0].mxu0 %v441
    %v522 = vpop.f32.mrb[0].mxu0
    %v523 = vadd.f32 0.0, %v522
    %v524 = vpop.f32.mrb[0].mxu0
    %525 = vmatprep.mubr.f32.mxu0 0.0
    %526 = vmatmul.mubr.f32.gmra.mrb[0].mxu0 %v444
    %v527 = vpop.f32.mrb[0].mxu0
    %v528 = vadd.f32 0.0, %v527
    %v529 = vpop.f32.mrb[0].mxu0
    %530 = vdwg.mxu0
    %v531 = vlaneseq
    %v532 = vshrl.u32 %v531, 7
    %v533 = vsub.s32 0, %v532
    %v534 = vrot.slane %v50, %v533
    %v536 = vsel %vm433, %v513, 0
    %v539 = vsel %vm433, %v518, 0
    %v542 = vsel %vm433, %v523, 0
    %v545 = vsel %vm433, %v528, 0
    %547 = vmatprep.subr.mxu0 0.0
    %548 = vmatpush1.msra.mxu0 %v36
    %549 = vmatprep.subr.mxu0 0.0
    %550 = vmatpush1.msra.mxu0 %v37
    %551 = vmatprep.subr.mxu0 0.0
    %552 = vmatpush1.msra.mxu0 %v38
    %553 = vmatprep.subr.mxu0 0.0
    %554 = vmatpush1.msra.mxu0 %v39
    %555 = vmatprep.subr.mxu0 0.0
    %556 = vmatpush1.msra.mxu0 0.0
    %557 = vmatprep.subr.mxu0 0.0
    %558 = vmatpush1.msra.mxu0 0.0
    %559 = vmatprep.subr.mxu0 0.0
    %560 = vmatpush1.msra.mxu0 0.0
    %561 = vmatprep.subr.mxu0 0.0
    %562 = vmatpush1.msra.mxu0 0.0
    %563 = vmatprep.subr.mxu0 0.0
    %564 = vmatpush1.msra.mxu0 0.0
    %565 = vmatprep.subr.mxu0 0.0
    %566 = vmatpush1.msra.mxu0 0.0
    %567 = vmatprep.subr.mxu0 0.0
    %568 = vmatpush1.msra.mxu0 0.0
    %569 = vmatprep.subr.mxu0 0.0
    %570 = vmatpush1.msra.mxu0 0.0
    %571 = vmatprep.subr.mxu0 0.0
    %572 = vmatpush1.msra.mxu0 0.0
    %573 = vmatprep.subr.mxu0 0.0
    %574 = vmatpush1.msra.mxu0 0.0
    %575 = vmatprep.subr.mxu0 0.0
    %576 = vmatpush1.msra.mxu0 0.0
    %577 = vmatprep.subr.mxu0 0.0
    %578 = vmatpush1.msra.mxu0 0.0
    %579 = vmatprep.subr.mxu0 0.0
    %580 = vmatpush1.msra.mxu0 0.0
    %581 = vmatprep.subr.mxu0 0.0
    %582 = vmatpush1.msra.mxu0 0.0
    %583 = vmatprep.subr.mxu0 0.0
    %584 = vmatpush1.msra.mxu0 0.0
    %585 = vmatprep.subr.mxu0 0.0
    %586 = vmatpush1.msra.mxu0 0.0
    %587 = vmatprep.subr.mxu0 0.0
    %588 = vmatpush1.msra.mxu0 0.0
    %589 = vmatprep.subr.mxu0 0.0
    %590 = vmatpush1.msra.mxu0 0.0
    %591 = vmatprep.subr.mxu0 0.0
    %592 = vmatpush1.msra.mxu0 0.0
    %593 = vmatprep.subr.mxu0 0.0
    %594 = vmatpush1.msra.mxu0 0.0
    %595 = vmatprep.subr.mxu0 0.0
    %596 = vmatpush1.msra.mxu0 0.0
    %597 = vmatprep.subr.mxu0 0.0
    %598 = vmatpush1.msra.mxu0 0.0
    %599 = vmatprep.subr.mxu0 0.0
    %600 = vmatpush1.msra.mxu0 0.0
    %601 = vmatprep.subr.mxu0 0.0
    %602 = vmatpush1.msra.mxu0 0.0
    %603 = vmatprep.subr.mxu0 0.0
    %604 = vmatpush1.msra.mxu0 0.0
    %605 = vmatprep.subr.mxu0 0.0
    %606 = vmatpush1.msra.mxu0 0.0
    %607 = vmatprep.subr.mxu0 0.0
    %608 = vmatpush1.msra.mxu0 0.0
    %609 = vmatprep.subr.mxu0 0.0
    %610 = vmatpush1.msra.mxu0 0.0
    %611 = vmatprep.mubr.f32.mxu0 0.0
    %612 = vmatmul.mubr.f32.gmra.mrb[0].mxu0 %v536
    %v613 = vpop.f32.mrb[0].mxu0
    %v614 = vadd.f32 %v534, %v613
    %v615 = vpop.f32.mrb[0].mxu0
    %616 = vmatprep.mubr.f32.mxu0 0.0
    %617 = vmatmul.mubr.f32.gmra.mrb[0].mxu0 %v539
    %v618 = vpop.f32.mrb[0].mxu0
    %v619 = vadd.f32 %v534, %v618
    %v620 = vpop.f32.mrb[0].mxu0
    %621 = vmatprep.mubr.f32.mxu0 0.0
    %622 = vmatmul.mubr.f32.gmra.mrb[0].mxu0 %v542
    %v623 = vpop.f32.mrb[0].mxu0
    %v624 = vadd.f32 %v534, %v623
    %v625 = vpop.f32.mrb[0].mxu0
    %626 = vmatprep.mubr.f32.mxu0 0.0
    %627 = vmatmul.mubr.f32.gmra.mrb[0].mxu0 %v545
    %v628 = vpop.f32.mrb[0].mxu0
    %v629 = vadd.f32 %v534, %v628
    %v630 = vpop.f32.mrb[0].mxu0
    %631 = vdwg.mxu0
    %v632 = vmax.f32 %v614, 0.0
    %v633 = vmax.f32 %v619, 0.0
    %v634 = vmax.f32 %v624, 0.0
    %v635 = vmax.f32 %v629, 0.0
    %v636 = vlaneseq
    %v637 = vshrl.u32 %v636, 7
    %v638 = vsub.s32 0, %v637
    %v639 = vrot.slane %v51, %v638
    %v641 = vsel %vm433, %v632, 0
    %v644 = vsel %vm433, %v633, 0
    %v647 = vsel %vm433, %v634, 0
    %v650 = vsel %vm433, %v635, 0
    %652 = vmatprep.subr.mxu0 0.0
    %653 = vmatpush1.msra.mxu0 %v40
    %654 = vmatprep.subr.mxu0 0.0
    %655 = vmatpush1.msra.mxu0 %v41
    %656 = vmatprep.subr.mxu0 0.0
    %657 = vmatpush1.msra.mxu0 %v42
    %658 = vmatprep.subr.mxu0 0.0
    %659 = vmatpush1.msra.mxu0 %v43
    %660 = vmatprep.subr.mxu0 0.0
    %661 = vmatpush1.msra.mxu0 0.0
    %662 = vmatprep.subr.mxu0 0.0
    %663 = vmatpush1.msra.mxu0 0.0
    %664 = vmatprep.subr.mxu0 0.0
    %665 = vmatpush1.msra.mxu0 0.0
    %666 = vmatprep.subr.mxu0 0.0
    %667 = vmatpush1.msra.mxu0 0.0
    %668 = vmatprep.subr.mxu0 0.0
    %669 = vmatpush1.msra.mxu0 0.0
    %670 = vmatprep.subr.mxu0 0.0
    %671 = vmatpush1.msra.mxu0 0.0
    %672 = vmatprep.subr.mxu0 0.0
    %673 = vmatpush1.msra.mxu0 0.0
    %674 = vmatprep.subr.mxu0 0.0
    %675 = vmatpush1.msra.mxu0 0.0
    %676 = vmatprep.subr.mxu0 0.0
    %677 = vmatpush1.msra.mxu0 0.0
    %678 = vmatprep.subr.mxu0 0.0
    %679 = vmatpush1.msra.mxu0 0.0
    %680 = vmatprep.subr.mxu0 0.0
    %681 = vmatpush1.msra.mxu0 0.0
    %682 = vmatprep.subr.mxu0 0.0
    %683 = vmatpush1.msra.mxu0 0.0
    %684 = vmatprep.subr.mxu0 0.0
    %685 = vmatpush1.msra.mxu0 0.0
    %686 = vmatprep.subr.mxu0 0.0
    %687 = vmatpush1.msra.mxu0 0.0
    %688 = vmatprep.subr.mxu0 0.0
    %689 = vmatpush1.msra.mxu0 0.0
    %690 = vmatprep.subr.mxu0 0.0
    %691 = vmatpush1.msra.mxu0 0.0
    %692 = vmatprep.subr.mxu0 0.0
    %693 = vmatpush1.msra.mxu0 0.0
    %694 = vmatprep.subr.mxu0 0.0
    %695 = vmatpush1.msra.mxu0 0.0
    %696 = vmatprep.subr.mxu0 0.0
    %697 = vmatpush1.msra.mxu0 0.0
    %698 = vmatprep.subr.mxu0 0.0
    %699 = vmatpush1.msra.mxu0 0.0
    %700 = vmatprep.subr.mxu0 0.0
    %701 = vmatpush1.msra.mxu0 0.0
    %702 = vmatprep.subr.mxu0 0.0
    %703 = vmatpush1.msra.mxu0 0.0
    %704 = vmatprep.subr.mxu0 0.0
    %705 = vmatpush1.msra.mxu0 0.0
    %706 = vmatprep.subr.mxu0 0.0
    %707 = vmatpush1.msra.mxu0 0.0
    %708 = vmatprep.subr.mxu0 0.0
    %709 = vmatpush1.msra.mxu0 0.0
    %710 = vmatprep.subr.mxu0 0.0
    %711 = vmatpush1.msra.mxu0 0.0
    %712 = vmatprep.subr.mxu0 0.0
    %713 = vmatpush1.msra.mxu0 0.0
    %714 = vmatprep.subr.mxu0 0.0
    %715 = vmatpush1.msra.mxu0 0.0
    %716 = vmatprep.mubr.f32.mxu0 0.0
    %717 = vmatmul.mubr.f32.gmra.mrb[0].mxu0 %v641
    %v718 = vpop.f32.mrb[0].mxu0
    %v719 = vadd.f32 %v639, %v718
    %v720 = vpop.f32.mrb[0].mxu0
    %721 = vmatprep.mubr.f32.mxu0 0.0
    %722 = vmatmul.mubr.f32.gmra.mrb[0].mxu0 %v644
    %v723 = vpop.f32.mrb[0].mxu0
    %v724 = vadd.f32 %v639, %v723
    %v725 = vpop.f32.mrb[0].mxu0
    %726 = vmatprep.mubr.f32.mxu0 0.0
    %727 = vmatmul.mubr.f32.gmra.mrb[0].mxu0 %v647
    %v728 = vpop.f32.mrb[0].mxu0
    %v729 = vadd.f32 %v639, %v728
    %v730 = vpop.f32.mrb[0].mxu0
    %731 = vmatprep.mubr.f32.mxu0 0.0
    %732 = vmatmul.mubr.f32.gmra.mrb[0].mxu0 %v650
    %v733 = vpop.f32.mrb[0].mxu0
    %v734 = vadd.f32 %v639, %v733
    %v735 = vpop.f32.mrb[0].mxu0
    %736 = vdwg.mxu0
    %v737 = vadd.f32 %v429, %v719
    %v738 = vadd.f32 %v430, %v724
    %v739 = vadd.f32 %v431, %v729
    %v740 = vadd.f32 %v432, %v734
    %v741 = vmax.f32 %v737, 0.0
    %v742 = vmax.f32 %v738, 0.0
    %v743 = vmax.f32 %v739, 0.0
    %v744 = vmax.f32 %v740, 0.0
    %745 = vmatprep.subr.mxu0 0.0
    %746 = vmatpush1.msra.mxu0 %v741
    %747 = vmatprep.subr.mxu0 0.0
    %748 = vmatpush1.msra.mxu0 %v742
    %749 = vmatprep.subr.mxu0 0.0
    %750 = vmatpush1.msra.mxu0 %v743
    %751 = vmatprep.subr.mxu0 0.0
    %752 = vmatpush1.msra.mxu0 %v744
    %753 = vmatprep.subr.mxu0 0.0
    %754 = vmatpush1.msra.mxu0 0.0
    %755 = vmatprep.subr.mxu0 0.0
    %756 = vmatpush1.msra.mxu0 0.0
    %757 = vmatprep.subr.mxu0 0.0
    %758 = vmatpush1.msra.mxu0 0.0
    %759 = vmatprep.subr.mxu0 0.0
    %760 = vmatpush1.msra.mxu0 0.0
    %761 = vmatprep.subr.mxu0 0.0
    %762 = vmatpush1.msra.mxu0 0.0
    %763 = vmatprep.subr.mxu0 0.0
    %764 = vmatpush1.msra.mxu0 0.0
    %765 = vmatprep.subr.mxu0 0.0
    %766 = vmatpush1.msra.mxu0 0.0
    %767 = vmatprep.subr.mxu0 0.0
    %768 = vmatpush1.msra.mxu0 0.0
    %769 = vmatprep.subr.mxu0 0.0
    %770 = vmatpush1.msra.mxu0 0.0
    %771 = vmatprep.subr.mxu0 0.0
    %772 = vmatpush1.msra.mxu0 0.0
    %773 = vmatprep.subr.mxu0 0.0
    %774 = vmatpush1.msra.mxu0 0.0
    %775 = vmatprep.subr.mxu0 0.0
    %776 = vmatpush1.msra.mxu0 0.0
    %777 = vmatprep.subr.mxu0 0.0
    %778 = vmatpush1.msra.mxu0 0.0
    %779 = vmatprep.subr.mxu0 0.0
    %780 = vmatpush1.msra.mxu0 0.0
    %781 = vmatprep.subr.mxu0 0.0
    %782 = vmatpush1.msra.mxu0 0.0
    %783 = vmatprep.subr.mxu0 0.0
    %784 = vmatpush1.msra.mxu0 0.0
    %785 = vmatprep.subr.mxu0 0.0
    %786 = vmatpush1.msra.mxu0 0.0
    %787 = vmatprep.subr.mxu0 0.0
    %788 = vmatpush1.msra.mxu0 0.0
    %789 = vmatprep.subr.mxu0 0.0
    %790 = vmatpush1.msra.mxu0 0.0
    %791 = vmatprep.subr.mxu0 0.0
    %792 = vmatpush1.msra.mxu0 0.0
    %793 = vmatprep.subr.mxu0 0.0
    %794 = vmatpush1.msra.mxu0 0.0
    %795 = vmatprep.subr.mxu0 0.0
    %796 = vmatpush1.msra.mxu0 0.0
    %797 = vmatprep.subr.mxu0 0.0
    %798 = vmatpush1.msra.mxu0 0.0
    %799 = vmatprep.subr.mxu0 0.0
    %800 = vmatpush1.msra.mxu0 0.0
    %801 = vmatprep.subr.mxu0 0.0
    %802 = vmatpush1.msra.mxu0 0.0
    %803 = vmatprep.subr.mxu0 0.0
    %804 = vmatpush1.msra.mxu0 0.0
    %805 = vmatprep.subr.mxu0 0.0
    %806 = vmatpush1.msra.mxu0 0.0
    %807 = vmatprep.subr.mxu0 0.0
    %808 = vmatpush1.msra.mxu0 0.0
    %809 = vmatprep.mubr.f32.mxu0 0.0
    %810 = vmatmul.mubr.f32.gmra.mrb[0].mxu0 %v435
    %v811 = vpop.f32.mrb[0].mxu0
    %v812 = vadd.f32 0.0, %v811
    %v813 = vpop.f32.mrb[0].mxu0
    %814 = vmatprep.mubr.f32.mxu0 0.0
    %815 = vmatmul.mubr.f32.gmra.mrb[0].mxu0 %v438
    %v816 = vpop.f32.mrb[0].mxu0
    %v817 = vadd.f32 0.0, %v816
    %v818 = vpop.f32.mrb[0].mxu0
    %819 = vmatprep.mubr.f32.mxu0 0.0
    %820 = vmatmul.mubr.f32.gmra.mrb[0].mxu0 %v441
    %v821 = vpop.f32.mrb[0].mxu0
    %v822 = vadd.f32 0.0, %v821
    %v823 = vpop.f32.mrb[0].mxu0
    %824 = vmatprep.mubr.f32.mxu0 0.0
    %825 = vmatmul.mubr.f32.gmra.mrb[0].mxu0 %v444
    %v826 = vpop.f32.mrb[0].mxu0
    %v827 = vadd.f32 0.0, %v826
    %v828 = vpop.f32.mrb[0].mxu0
    %829 = vdwg.mxu0
    %v831 = vsel %vm433, %v812, 0
    %v834 = vsel %vm433, %v817, 0
    %v837 = vsel %vm433, %v822, 0
    %v840 = vsel %vm433, %v827, 0
    %842 = vmatprep.subr.mxu0 0.0
    %843 = vmatpush1.msra.mxu0 %v36
    %844 = vmatprep.subr.mxu0 0.0
    %845 = vmatpush1.msra.mxu0 %v37
    %846 = vmatprep.subr.mxu0 0.0
    %847 = vmatpush1.msra.mxu0 %v38
    %848 = vmatprep.subr.mxu0 0.0
    %849 = vmatpush1.msra.mxu0 %v39
    %850 = vmatprep.subr.mxu0 0.0
    %851 = vmatpush1.msra.mxu0 0.0
    %852 = vmatprep.subr.mxu0 0.0
    %853 = vmatpush1.msra.mxu0 0.0
    %854 = vmatprep.subr.mxu0 0.0
    %855 = vmatpush1.msra.mxu0 0.0
    %856 = vmatprep.subr.mxu0 0.0
    %857 = vmatpush1.msra.mxu0 0.0
    %858 = vmatprep.subr.mxu0 0.0
    %859 = vmatpush1.msra.mxu0 0.0
    %860 = vmatprep.subr.mxu0 0.0
    %861 = vmatpush1.msra.mxu0 0.0
    %862 = vmatprep.subr.mxu0 0.0
    %863 = vmatpush1.msra.mxu0 0.0
    %864 = vmatprep.subr.mxu0 0.0
    %865 = vmatpush1.msra.mxu0 0.0
    %866 = vmatprep.subr.mxu0 0.0
    %867 = vmatpush1.msra.mxu0 0.0
    %868 = vmatprep.subr.mxu0 0.0
    %869 = vmatpush1.msra.mxu0 0.0
    %870 = vmatprep.subr.mxu0 0.0
    %871 = vmatpush1.msra.mxu0 0.0
    %872 = vmatprep.subr.mxu0 0.0
    %873 = vmatpush1.msra.mxu0 0.0
    %874 = vmatprep.subr.mxu0 0.0
    %875 = vmatpush1.msra.mxu0 0.0
    %876 = vmatprep.subr.mxu0 0.0
    %877 = vmatpush1.msra.mxu0 0.0
    %878 = vmatprep.subr.mxu0 0.0
    %879 = vmatpush1.msra.mxu0 0.0
    %880 = vmatprep.subr.mxu0 0.0
    %881 = vmatpush1.msra.mxu0 0.0
    %882 = vmatprep.subr.mxu0 0.0
    %883 = vmatpush1.msra.mxu0 0.0
    %884 = vmatprep.subr.mxu0 0.0
    %885 = vmatpush1.msra.mxu0 0.0
    %886 = vmatprep.subr.mxu0 0.0
    %887 = vmatpush1.msra.mxu0 0.0
    %888 = vmatprep.subr.mxu0 0.0
    %889 = vmatpush1.msra.mxu0 0.0
    %890 = vmatprep.subr.mxu0 0.0
    %891 = vmatpush1.msra.mxu0 0.0
    %892 = vmatprep.subr.mxu0 0.0
    %893 = vmatpush1.msra.mxu0 0.0
    %894 = vmatprep.subr.mxu0 0.0
    %895 = vmatpush1.msra.mxu0 0.0
    %896 = vmatprep.subr.mxu0 0.0
    %897 = vmatpush1.msra.mxu0 0.0
    %898 = vmatprep.subr.mxu0 0.0
    %899 = vmatpush1.msra.mxu0 0.0
    %900 = vmatprep.subr.mxu0 0.0
    %901 = vmatpush1.msra.mxu0 0.0
    %902 = vmatprep.subr.mxu0 0.0
    %903 = vmatpush1.msra.mxu0 0.0
    %904 = vmatprep.subr.mxu0 0.0
    %905 = vmatpush1.msra.mxu0 0.0
    %906 = vmatprep.mubr.f32.mxu0 0.0
    %907 = vmatmul.mubr.f32.gmra.mrb[0].mxu0 %v831
    %v908 = vpop.f32.mrb[0].mxu0
    %v909 = vadd.f32 %v534, %v908
    %v910 = vpop.f32.mrb[0].mxu0
    %911 = vmatprep.mubr.f32.mxu0 0.0
    %912 = vmatmul.mubr.f32.gmra.mrb[0].mxu0 %v834
    %v913 = vpop.f32.mrb[0].mxu0
    %v914 = vadd.f32 %v534, %v913
    %v915 = vpop.f32.mrb[0].mxu0
    %916 = vmatprep.mubr.f32.mxu0 0.0
    %917 = vmatmul.mubr.f32.gmra.mrb[0].mxu0 %v837
    %v918 = vpop.f32.mrb[0].mxu0
    %v919 = vadd.f32 %v534, %v918
    %v920 = vpop.f32.mrb[0].mxu0
    %921 = vmatprep.mubr.f32.mxu0 0.0
    %922 = vmatmul.mubr.f32.gmra.mrb[0].mxu0 %v840
    %v923 = vpop.f32.mrb[0].mxu0
    %v924 = vadd.f32 %v534, %v923
    %v925 = vpop.f32.mrb[0].mxu0
    %926 = vdwg.mxu0
    %v927 = vmax.f32 %v909, 0.0
    %v928 = vmax.f32 %v914, 0.0
    %v929 = vmax.f32 %v919, 0.0
    %v930 = vmax.f32 %v924, 0.0
    %v932 = vsel %vm433, %v927, 0
    %v935 = vsel %vm433, %v928, 0
    %v938 = vsel %vm433, %v929, 0
    %v941 = vsel %vm433, %v930, 0
    %943 = vmatprep.subr.mxu0 0.0
    %944 = vmatpush1.msra.mxu0 %v40
    %945 = vmatprep.subr.mxu0 0.0
    %946 = vmatpush1.msra.mxu0 %v41
    %947 = vmatprep.subr.mxu0 0.0
    %948 = vmatpush1.msra.mxu0 %v42
    %949 = vmatprep.subr.mxu0 0.0
    %950 = vmatpush1.msra.mxu0 %v43
    %951 = vmatprep.subr.mxu0 0.0
    %952 = vmatpush1.msra.mxu0 0.0
    %953 = vmatprep.subr.mxu0 0.0
    %954 = vmatpush1.msra.mxu0 0.0
    %955 = vmatprep.subr.mxu0 0.0
    %956 = vmatpush1.msra.mxu0 0.0
    %957 = vmatprep.subr.mxu0 0.0
    %958 = vmatpush1.msra.mxu0 0.0
    %959 = vmatprep.subr.mxu0 0.0
    %960 = vmatpush1.msra.mxu0 0.0
    %961 = vmatprep.subr.mxu0 0.0
    %962 = vmatpush1.msra.mxu0 0.0
    %963 = vmatprep.subr.mxu0 0.0
    %964 = vmatpush1.msra.mxu0 0.0
    %965 = vmatprep.subr.mxu0 0.0
    %966 = vmatpush1.msra.mxu0 0.0
    %967 = vmatprep.subr.mxu0 0.0
    %968 = vmatpush1.msra.mxu0 0.0
    %969 = vmatprep.subr.mxu0 0.0
    %970 = vmatpush1.msra.mxu0 0.0
    %971 = vmatprep.subr.mxu0 0.0
    %972 = vmatpush1.msra.mxu0 0.0
    %973 = vmatprep.subr.mxu0 0.0
    %974 = vmatpush1.msra.mxu0 0.0
    %975 = vmatprep.subr.mxu0 0.0
    %976 = vmatpush1.msra.mxu0 0.0
    %977 = vmatprep.subr.mxu0 0.0
    %978 = vmatpush1.msra.mxu0 0.0
    %979 = vmatprep.subr.mxu0 0.0
    %980 = vmatpush1.msra.mxu0 0.0
    %981 = vmatprep.subr.mxu0 0.0
    %982 = vmatpush1.msra.mxu0 0.0
    %983 = vmatprep.subr.mxu0 0.0
    %984 = vmatpush1.msra.mxu0 0.0
    %985 = vmatprep.subr.mxu0 0.0
    %986 = vmatpush1.msra.mxu0 0.0
    %987 = vmatprep.subr.mxu0 0.0
    %988 = vmatpush1.msra.mxu0 0.0
    %989 = vmatprep.subr.mxu0 0.0
    %990 = vmatpush1.msra.mxu0 0.0
    %991 = vmatprep.subr.mxu0 0.0
    %992 = vmatpush1.msra.mxu0 0.0
    %993 = vmatprep.subr.mxu0 0.0
    %994 = vmatpush1.msra.mxu0 0.0
    %995 = vmatprep.subr.mxu0 0.0
    %996 = vmatpush1.msra.mxu0 0.0
    %997 = vmatprep.subr.mxu0 0.0
    %998 = vmatpush1.msra.mxu0 0.0
    %999 = vmatprep.subr.mxu0 0.0
    %1000 = vmatpush1.msra.mxu0 0.0
    %1001 = vmatprep.subr.mxu0 0.0
    %1002 = vmatpush1.msra.mxu0 0.0
    %1003 = vmatprep.subr.mxu0 0.0
    %1004 = vmatpush1.msra.mxu0 0.0
    %1005 = vmatprep.subr.mxu0 0.0
    %1006 = vmatpush1.msra.mxu0 0.0
    %1007 = vmatprep.mubr.f32.mxu0 0.0
    %1008 = vmatmul.mubr.f32.gmra.mrb[0].mxu0 %v932
    %v1009 = vpop.f32.mrb[0].mxu0
    %v1010 = vadd.f32 %v639, %v1009
    %v1011 = vpop.f32.mrb[0].mxu0
    %1012 = vmatprep.mubr.f32.mxu0 0.0
    %1013 = vmatmul.mubr.f32.gmra.mrb[0].mxu0 %v935
    %v1014 = vpop.f32.mrb[0].mxu0
    %v1015 = vadd.f32 %v639, %v1014
    %v1016 = vpop.f32.mrb[0].mxu0
    %1017 = vmatprep.mubr.f32.mxu0 0.0
    %1018 = vmatmul.mubr.f32.gmra.mrb[0].mxu0 %v938
    %v1019 = vpop.f32.mrb[0].mxu0
    %v1020 = vadd.f32 %v639, %v1019
    %v1021 = vpop.f32.mrb[0].mxu0
    %1022 = vmatprep.mubr.f32.mxu0 0.0
    %1023 = vmatmul.mubr.f32.gmra.mrb[0].mxu0 %v941
    %v1024 = vpop.f32.mrb[0].mxu0
    %v1025 = vadd.f32 %v639, %v1024
    %v1026 = vpop.f32.mrb[0].mxu0
    %1027 = vdwg.mxu0
    %v1028 = vadd.f32 %v429, %v1010
    %v1029 = vadd.f32 %v430, %v1015
    %v1030 = vadd.f32 %v431, %v1020
    %v1031 = vadd.f32 %v432, %v1025
    %v1032 = vmax.f32 %v1028, 0.0
    %v1033 = vmax.f32 %v1029, 0.0
    %v1034 = vmax.f32 %v1030, 0.0
    %v1035 = vmax.f32 %v1031, 0.0
    %1036 = vmatprep.subr.mxu0 0.0
    %1037 = vmatpush1.msra.mxu0 %v1032
    %1038 = vmatprep.subr.mxu0 0.0
    %1039 = vmatpush1.msra.mxu0 %v1033
    %1040 = vmatprep.subr.mxu0 0.0
    %1041 = vmatpush1.msra.mxu0 %v1034
    %1042 = vmatprep.subr.mxu0 0.0
    %1043 = vmatpush1.msra.mxu0 %v1035
    %1044 = vmatprep.subr.mxu0 0.0
    %1045 = vmatpush1.msra.mxu0 0.0
    %1046 = vmatprep.subr.mxu0 0.0
    %1047 = vmatpush1.msra.mxu0 0.0
    %1048 = vmatprep.subr.mxu0 0.0
    %1049 = vmatpush1.msra.mxu0 0.0
    %1050 = vmatprep.subr.mxu0 0.0
    %1051 = vmatpush1.msra.mxu0 0.0
    %1052 = vmatprep.subr.mxu0 0.0
    %1053 = vmatpush1.msra.mxu0 0.0
    %1054 = vmatprep.subr.mxu0 0.0
    %1055 = vmatpush1.msra.mxu0 0.0
    %1056 = vmatprep.subr.mxu0 0.0
    %1057 = vmatpush1.msra.mxu0 0.0
    %1058 = vmatprep.subr.mxu0 0.0
    %1059 = vmatpush1.msra.mxu0 0.0
    %1060 = vmatprep.subr.mxu0 0.0
    %1061 = vmatpush1.msra.mxu0 0.0
    %1062 = vmatprep.subr.mxu0 0.0
    %1063 = vmatpush1.msra.mxu0 0.0
    %1064 = vmatprep.subr.mxu0 0.0
    %1065 = vmatpush1.msra.mxu0 0.0
    %1066 = vmatprep.subr.mxu0 0.0
    %1067 = vmatpush1.msra.mxu0 0.0
    %1068 = vmatprep.subr.mxu0 0.0
    %1069 = vmatpush1.msra.mxu0 0.0
    %1070 = vmatprep.subr.mxu0 0.0
    %1071 = vmatpush1.msra.mxu0 0.0
    %1072 = vmatprep.subr.mxu0 0.0
    %1073 = vmatpush1.msra.mxu0 0.0
    %1074 = vmatprep.subr.mxu0 0.0
    %1075 = vmatpush1.msra.mxu0 0.0
    %1076 = vmatprep.subr.mxu0 0.0
    %1077 = vmatpush1.msra.mxu0 0.0
    %1078 = vmatprep.subr.mxu0 0.0
    %1079 = vmatpush1.msra.mxu0 0.0
    %1080 = vmatprep.subr.mxu0 0.0
    %1081 = vmatpush1.msra.mxu0 0.0
    %1082 = vmatprep.subr.mxu0 0.0
    %1083 = vmatpush1.msra.mxu0 0.0
    %1084 = vmatprep.subr.mxu0 0.0
    %1085 = vmatpush1.msra.mxu0 0.0
    %1086 = vmatprep.subr.mxu0 0.0
    %1087 = vmatpush1.msra.mxu0 0.0
    %1088 = vmatprep.subr.mxu0 0.0
    %1089 = vmatpush1.msra.mxu0 0.0
    %1090 = vmatprep.subr.mxu0 0.0
    %1091 = vmatpush1.msra.mxu0 0.0
    %1092 = vmatprep.subr.mxu0 0.0
    %1093 = vmatpush1.msra.mxu0 0.0
    %1094 = vmatprep.subr.mxu0 0.0
    %1095 = vmatpush1.msra.mxu0 0.0
    %1096 = vmatprep.subr.mxu0 0.0
    %1097 = vmatpush1.msra.mxu0 0.0
    %1098 = vmatprep.subr.mxu0 0.0
    %1099 = vmatpush1.msra.mxu0 0.0
    %1100 = vmatprep.mubr.f32.mxu0 0.0
    %1101 = vmatmul.mubr.f32.gmra.mrb[0].mxu0 %v435
    %v1102 = vpop.f32.mrb[0].mxu0
    %v1103 = vadd.f32 0.0, %v1102
    %v1104 = vpop.f32.mrb[0].mxu0
    %1105 = vmatprep.mubr.f32.mxu0 0.0
    %1106 = vmatmul.mubr.f32.gmra.mrb[0].mxu0 %v438
    %v1107 = vpop.f32.mrb[0].mxu0
    %v1108 = vadd.f32 0.0, %v1107
    %v1109 = vpop.f32.mrb[0].mxu0
    %1110 = vmatprep.mubr.f32.mxu0 0.0
    %1111 = vmatmul.mubr.f32.gmra.mrb[0].mxu0 %v441
    %v1112 = vpop.f32.mrb[0].mxu0
    %v1113 = vadd.f32 0.0, %v1112
    %v1114 = vpop.f32.mrb[0].mxu0
    %1115 = vmatprep.mubr.f32.mxu0 0.0
    %1116 = vmatmul.mubr.f32.gmra.mrb[0].mxu0 %v444
    %v1117 = vpop.f32.mrb[0].mxu0
    %v1118 = vadd.f32 0.0, %v1117
    %v1119 = vpop.f32.mrb[0].mxu0
    %1120 = vdwg.mxu0
    %v1122 = vsel %vm433, %v1103, 0
    %v1125 = vsel %vm433, %v1108, 0
    %v1128 = vsel %vm433, %v1113, 0
    %v1131 = vsel %vm433, %v1118, 0
    %1133 = vmatprep.subr.mxu0 0.0
    %1134 = vmatpush1.msra.mxu0 %v36
    %1135 = vmatprep.subr.mxu0 0.0
    %1136 = vmatpush1.msra.mxu0 %v37
    %1137 = vmatprep.subr.mxu0 0.0
    %1138 = vmatpush1.msra.mxu0 %v38
    %1139 = vmatprep.subr.mxu0 0.0
    %1140 = vmatpush1.msra.mxu0 %v39
    %1141 = vmatprep.subr.mxu0 0.0
    %1142 = vmatpush1.msra.mxu0 0.0
    %1143 = vmatprep.subr.mxu0 0.0
    %1144 = vmatpush1.msra.mxu0 0.0
    %1145 = vmatprep.subr.mxu0 0.0
    %1146 = vmatpush1.msra.mxu0 0.0
    %1147 = vmatprep.subr.mxu0 0.0
    %1148 = vmatpush1.msra.mxu0 0.0
    %1149 = vmatprep.subr.mxu0 0.0
    %1150 = vmatpush1.msra.mxu0 0.0
    %1151 = vmatprep.subr.mxu0 0.0
    %1152 = vmatpush1.msra.mxu0 0.0
    %1153 = vmatprep.subr.mxu0 0.0
    %1154 = vmatpush1.msra.mxu0 0.0
    %1155 = vmatprep.subr.mxu0 0.0
    %1156 = vmatpush1.msra.mxu0 0.0
    %1157 = vmatprep.subr.mxu0 0.0
    %1158 = vmatpush1.msra.mxu0 0.0
    %1159 = vmatprep.subr.mxu0 0.0
    %1160 = vmatpush1.msra.mxu0 0.0
    %1161 = vmatprep.subr.mxu0 0.0
    %1162 = vmatpush1.msra.mxu0 0.0
    %1163 = vmatprep.subr.mxu0 0.0
    %1164 = vmatpush1.msra.mxu0 0.0
    %1165 = vmatprep.subr.mxu0 0.0
    %1166 = vmatpush1.msra.mxu0 0.0
    %1167 = vmatprep.subr.mxu0 0.0
    %1168 = vmatpush1.msra.mxu0 0.0
    %1169 = vmatprep.subr.mxu0 0.0
    %1170 = vmatpush1.msra.mxu0 0.0
    %1171 = vmatprep.subr.mxu0 0.0
    %1172 = vmatpush1.msra.mxu0 0.0
    %1173 = vmatprep.subr.mxu0 0.0
    %1174 = vmatpush1.msra.mxu0 0.0
    %1175 = vmatprep.subr.mxu0 0.0
    %1176 = vmatpush1.msra.mxu0 0.0
    %1177 = vmatprep.subr.mxu0 0.0
    %1178 = vmatpush1.msra.mxu0 0.0
    %1179 = vmatprep.subr.mxu0 0.0
    %1180 = vmatpush1.msra.mxu0 0.0
    %1181 = vmatprep.subr.mxu0 0.0
    %1182 = vmatpush1.msra.mxu0 0.0
    %1183 = vmatprep.subr.mxu0 0.0
    %1184 = vmatpush1.msra.mxu0 0.0
    %1185 = vmatprep.subr.mxu0 0.0
    %1186 = vmatpush1.msra.mxu0 0.0
    %1187 = vmatprep.subr.mxu0 0.0
    %1188 = vmatpush1.msra.mxu0 0.0
    %1189 = vmatprep.subr.mxu0 0.0
    %1190 = vmatpush1.msra.mxu0 0.0
    %1191 = vmatprep.subr.mxu0 0.0
    %1192 = vmatpush1.msra.mxu0 0.0
    %1193 = vmatprep.subr.mxu0 0.0
    %1194 = vmatpush1.msra.mxu0 0.0
    %1195 = vmatprep.subr.mxu0 0.0
    %1196 = vmatpush1.msra.mxu0 0.0
    %1197 = vmatprep.mubr.f32.mxu0 0.0
    %1198 = vmatmul.mubr.f32.gmra.mrb[0].mxu0 %v1122
    %v1199 = vpop.f32.mrb[0].mxu0
    %v1200 = vadd.f32 %v534, %v1199
    %v1201 = vpop.f32.mrb[0].mxu0
    %1202 = vmatprep.mubr.f32.mxu0 0.0
    %1203 = vmatmul.mubr.f32.gmra.mrb[0].mxu0 %v1125
    %v1204 = vpop.f32.mrb[0].mxu0
    %v1205 = vadd.f32 %v534, %v1204
    %v1206 = vpop.f32.mrb[0].mxu0
    %1207 = vmatprep.mubr.f32.mxu0 0.0
    %1208 = vmatmul.mubr.f32.gmra.mrb[0].mxu0 %v1128
    %v1209 = vpop.f32.mrb[0].mxu0
    %v1210 = vadd.f32 %v534, %v1209
    %v1211 = vpop.f32.mrb[0].mxu0
    %1212 = vmatprep.mubr.f32.mxu0 0.0
    %1213 = vmatmul.mubr.f32.gmra.mrb[0].mxu0 %v1131
    %v1214 = vpop.f32.mrb[0].mxu0
    %v1215 = vadd.f32 %v534, %v1214
    %v1216 = vpop.f32.mrb[0].mxu0
    %1217 = vdwg.mxu0
    %v1218 = vmax.f32 %v1200, 0.0
    %v1219 = vmax.f32 %v1205, 0.0
    %v1220 = vmax.f32 %v1210, 0.0
    %v1221 = vmax.f32 %v1215, 0.0
    %v1223 = vsel %vm433, %v1218, 0
    %v1226 = vsel %vm433, %v1219, 0
    %v1229 = vsel %vm433, %v1220, 0
    %v1232 = vsel %vm433, %v1221, 0
    %1234 = vmatprep.subr.mxu0 0.0
    %1235 = vmatpush1.msra.mxu0 %v40
    %1236 = vmatprep.subr.mxu0 0.0
    %1237 = vmatpush1.msra.mxu0 %v41
    %1238 = vmatprep.subr.mxu0 0.0
    %1239 = vmatpush1.msra.mxu0 %v42
    %1240 = vmatprep.subr.mxu0 0.0
    %1241 = vmatpush1.msra.mxu0 %v43
    %1242 = vmatprep.subr.mxu0 0.0
    %1243 = vmatpush1.msra.mxu0 0.0
    %1244 = vmatprep.subr.mxu0 0.0
    %1245 = vmatpush1.msra.mxu0 0.0
    %1246 = vmatprep.subr.mxu0 0.0
    %1247 = vmatpush1.msra.mxu0 0.0
    %1248 = vmatprep.subr.mxu0 0.0
    %1249 = vmatpush1.msra.mxu0 0.0
    %1250 = vmatprep.subr.mxu0 0.0
    %1251 = vmatpush1.msra.mxu0 0.0
    %1252 = vmatprep.subr.mxu0 0.0
    %1253 = vmatpush1.msra.mxu0 0.0
    %1254 = vmatprep.subr.mxu0 0.0
    %1255 = vmatpush1.msra.mxu0 0.0
    %1256 = vmatprep.subr.mxu0 0.0
    %1257 = vmatpush1.msra.mxu0 0.0
    %1258 = vmatprep.subr.mxu0 0.0
    %1259 = vmatpush1.msra.mxu0 0.0
    %1260 = vmatprep.subr.mxu0 0.0
    %1261 = vmatpush1.msra.mxu0 0.0
    %1262 = vmatprep.subr.mxu0 0.0
    %1263 = vmatpush1.msra.mxu0 0.0
    %1264 = vmatprep.subr.mxu0 0.0
    %1265 = vmatpush1.msra.mxu0 0.0
    %1266 = vmatprep.subr.mxu0 0.0
    %1267 = vmatpush1.msra.mxu0 0.0
    %1268 = vmatprep.subr.mxu0 0.0
    %1269 = vmatpush1.msra.mxu0 0.0
    %1270 = vmatprep.subr.mxu0 0.0
    %1271 = vmatpush1.msra.mxu0 0.0
    %1272 = vmatprep.subr.mxu0 0.0
    %1273 = vmatpush1.msra.mxu0 0.0
    %1274 = vmatprep.subr.mxu0 0.0
    %1275 = vmatpush1.msra.mxu0 0.0
    %1276 = vmatprep.subr.mxu0 0.0
    %1277 = vmatpush1.msra.mxu0 0.0
    %1278 = vmatprep.subr.mxu0 0.0
    %1279 = vmatpush1.msra.mxu0 0.0
    %1280 = vmatprep.subr.mxu0 0.0
    %1281 = vmatpush1.msra.mxu0 0.0
    %1282 = vmatprep.subr.mxu0 0.0
    %1283 = vmatpush1.msra.mxu0 0.0
    %1284 = vmatprep.subr.mxu0 0.0
    %1285 = vmatpush1.msra.mxu0 0.0
    %1286 = vmatprep.subr.mxu0 0.0
    %1287 = vmatpush1.msra.mxu0 0.0
    %1288 = vmatprep.subr.mxu0 0.0
    %1289 = vmatpush1.msra.mxu0 0.0
    %1290 = vmatprep.subr.mxu0 0.0
    %1291 = vmatpush1.msra.mxu0 0.0
    %1292 = vmatprep.subr.mxu0 0.0
    %1293 = vmatpush1.msra.mxu0 0.0
    %1294 = vmatprep.subr.mxu0 0.0
    %1295 = vmatpush1.msra.mxu0 0.0
    %1296 = vmatprep.subr.mxu0 0.0
    %1297 = vmatpush1.msra.mxu0 0.0
    %1298 = vmatprep.mubr.f32.mxu0 0.0
    %1299 = vmatmul.mubr.f32.gmra.mrb[0].mxu0 %v1223
    %v1300 = vpop.f32.mrb[0].mxu0
    %v1301 = vadd.f32 %v639, %v1300
    %v1302 = vpop.f32.mrb[0].mxu0
    %1303 = vmatprep.mubr.f32.mxu0 0.0
    %1304 = vmatmul.mubr.f32.gmra.mrb[0].mxu0 %v1226
    %v1305 = vpop.f32.mrb[0].mxu0
    %v1306 = vadd.f32 %v639, %v1305
    %v1307 = vpop.f32.mrb[0].mxu0
    %1308 = vmatprep.mubr.f32.mxu0 0.0
    %1309 = vmatmul.mubr.f32.gmra.mrb[0].mxu0 %v1229
    %v1310 = vpop.f32.mrb[0].mxu0
    %v1311 = vadd.f32 %v639, %v1310
    %v1312 = vpop.f32.mrb[0].mxu0
    %1313 = vmatprep.mubr.f32.mxu0 0.0
    %1314 = vmatmul.mubr.f32.gmra.mrb[0].mxu0 %v1232
    %v1315 = vpop.f32.mrb[0].mxu0
    %v1316 = vadd.f32 %v639, %v1315
    %v1317 = vpop.f32.mrb[0].mxu0
    %1318 = vdwg.mxu0
    %v1319 = vadd.f32 %v429, %v1301
    %v1320 = vadd.f32 %v430, %v1306
    %v1321 = vadd.f32 %v431, %v1311
    %v1322 = vadd.f32 %v432, %v1316
    %v1323 = vmax.f32 %v1319, 0.0
    %v1324 = vmax.f32 %v1320, 0.0
    %v1325 = vmax.f32 %v1321, 0.0
    %v1326 = vmax.f32 %v1322, 0.0
    %v1328 = vsel %vm433, %v92, 0
    %v1331 = vsel %vm433, %v93, 0
    %1333 = vmatprep.subr.mxu0 0.0
    %1334 = vmatpush1.msra.mxu0 %v1323
    %1335 = vmatprep.subr.mxu0 0.0
    %1336 = vmatpush1.msra.mxu0 %v1324
    %1337 = vmatprep.subr.mxu0 0.0
    %1338 = vmatpush1.msra.mxu0 %v1325
    %1339 = vmatprep.subr.mxu0 0.0
    %1340 = vmatpush1.msra.mxu0 %v1326
    %1341 = vmatprep.subr.mxu0 0.0
    %1342 = vmatpush1.msra.mxu0 0.0
    %1343 = vmatprep.subr.mxu0 0.0
    %1344 = vmatpush1.msra.mxu0 0.0
    %1345 = vmatprep.subr.mxu0 0.0
    %1346 = vmatpush1.msra.mxu0 0.0
    %1347 = vmatprep.subr.mxu0 0.0
    %1348 = vmatpush1.msra.mxu0 0.0
    %1349 = vmatprep.subr.mxu0 0.0
    %1350 = vmatpush1.msra.mxu0 0.0
    %1351 = vmatprep.subr.mxu0 0.0
    %1352 = vmatpush1.msra.mxu0 0.0
    %1353 = vmatprep.subr.mxu0 0.0
    %1354 = vmatpush1.msra.mxu0 0.0
    %1355 = vmatprep.subr.mxu0 0.0
    %1356 = vmatpush1.msra.mxu0 0.0
    %1357 = vmatprep.subr.mxu0 0.0
    %1358 = vmatpush1.msra.mxu0 0.0
    %1359 = vmatprep.subr.mxu0 0.0
    %1360 = vmatpush1.msra.mxu0 0.0
    %1361 = vmatprep.subr.mxu0 0.0
    %1362 = vmatpush1.msra.mxu0 0.0
    %1363 = vmatprep.subr.mxu0 0.0
    %1364 = vmatpush1.msra.mxu0 0.0
    %1365 = vmatprep.subr.mxu0 0.0
    %1366 = vmatpush1.msra.mxu0 0.0
    %1367 = vmatprep.subr.mxu0 0.0
    %1368 = vmatpush1.msra.mxu0 0.0
    %1369 = vmatprep.subr.mxu0 0.0
    %1370 = vmatpush1.msra.mxu0 0.0
    %1371 = vmatprep.subr.mxu0 0.0
    %1372 = vmatpush1.msra.mxu0 0.0
    %1373 = vmatprep.subr.mxu0 0.0
    %1374 = vmatpush1.msra.mxu0 0.0
    %1375 = vmatprep.subr.mxu0 0.0
    %1376 = vmatpush1.msra.mxu0 0.0
    %1377 = vmatprep.subr.mxu0 0.0
    %1378 = vmatpush1.msra.mxu0 0.0
    %1379 = vmatprep.subr.mxu0 0.0
    %1380 = vmatpush1.msra.mxu0 0.0
    %1381 = vmatprep.subr.mxu0 0.0
    %1382 = vmatpush1.msra.mxu0 0.0
    %1383 = vmatprep.subr.mxu0 0.0
    %1384 = vmatpush1.msra.mxu0 0.0
    %1385 = vmatprep.subr.mxu0 0.0
    %1386 = vmatpush1.msra.mxu0 0.0
    %1387 = vmatprep.subr.mxu0 0.0
    %1388 = vmatpush1.msra.mxu0 0.0
    %1389 = vmatprep.subr.mxu0 0.0
    %1390 = vmatpush1.msra.mxu0 0.0
    %1391 = vmatprep.subr.mxu0 0.0
    %1392 = vmatpush1.msra.mxu0 0.0
    %1393 = vmatprep.subr.mxu0 0.0
    %1394 = vmatpush1.msra.mxu0 0.0
    %1395 = vmatprep.subr.mxu0 0.0
    %1396 = vmatpush1.msra.mxu0 0.0
    %1397 = vmatprep.mubr.f32.mxu0 0.0
    %1398 = vmatmul.mubr.f32.gmra.mrb[0].mxu0 %v1328
    %v1399 = vpop.f32.mrb[0].mxu0
    %v1400 = vadd.f32 0.0, %v1399
    %v1401 = vpop.f32.mrb[0].mxu0
    %1402 = vmatprep.mubr.f32.mxu0 0.0
    %1403 = vmatmul.mubr.f32.gmra.mrb[0].mxu0 %v1331
    %v1404 = vpop.f32.mrb[0].mxu0
    %v1405 = vadd.f32 0.0, %v1404
    %v1406 = vpop.f32.mrb[0].mxu0
    %1407 = vdwg.mxu0
    %v1409 = vsel %vm433, %v1400, 0
    %v1412 = vsel %vm433, %v1405, 0
    %1414 = vmatprep.subr.mxu0 0.0
    %1415 = vmatpush1.msra.mxu0 %v45
    %1416 = vmatprep.subr.mxu0 0.0
    %1417 = vmatpush1.msra.mxu0 %v46
    %1418 = vmatprep.subr.mxu0 0.0
    %1419 = vmatpush1.msra.mxu0 %v47
    %1420 = vmatprep.subr.mxu0 0.0
    %1421 = vmatpush1.msra.mxu0 %v48
    %1422 = vmatprep.subr.mxu0 0.0
    %1423 = vmatpush1.msra.mxu0 0.0
    %1424 = vmatprep.subr.mxu0 0.0
    %1425 = vmatpush1.msra.mxu0 0.0
    %1426 = vmatprep.subr.mxu0 0.0
    %1427 = vmatpush1.msra.mxu0 0.0
    %1428 = vmatprep.subr.mxu0 0.0
    %1429 = vmatpush1.msra.mxu0 0.0
    %1430 = vmatprep.subr.mxu0 0.0
    %1431 = vmatpush1.msra.mxu0 0.0
    %1432 = vmatprep.subr.mxu0 0.0
    %1433 = vmatpush1.msra.mxu0 0.0
    %1434 = vmatprep.subr.mxu0 0.0
    %1435 = vmatpush1.msra.mxu0 0.0
    %1436 = vmatprep.subr.mxu0 0.0
    %1437 = vmatpush1.msra.mxu0 0.0
    %1438 = vmatprep.subr.mxu0 0.0
    %1439 = vmatpush1.msra.mxu0 0.0
    %1440 = vmatprep.subr.mxu0 0.0
    %1441 = vmatpush1.msra.mxu0 0.0
    %1442 = vmatprep.subr.mxu0 0.0
    %1443 = vmatpush1.msra.mxu0 0.0
    %1444 = vmatprep.subr.mxu0 0.0
    %1445 = vmatpush1.msra.mxu0 0.0
    %1446 = vmatprep.subr.mxu0 0.0
    %1447 = vmatpush1.msra.mxu0 0.0
    %1448 = vmatprep.subr.mxu0 0.0
    %1449 = vmatpush1.msra.mxu0 0.0
    %1450 = vmatprep.subr.mxu0 0.0
    %1451 = vmatpush1.msra.mxu0 0.0
    %1452 = vmatprep.subr.mxu0 0.0
    %1453 = vmatpush1.msra.mxu0 0.0
    %1454 = vmatprep.subr.mxu0 0.0
    %1455 = vmatpush1.msra.mxu0 0.0
    %1456 = vmatprep.subr.mxu0 0.0
    %1457 = vmatpush1.msra.mxu0 0.0
    %1458 = vmatprep.subr.mxu0 0.0
    %1459 = vmatpush1.msra.mxu0 0.0
    %1460 = vmatprep.subr.mxu0 0.0
    %1461 = vmatpush1.msra.mxu0 0.0
    %1462 = vmatprep.subr.mxu0 0.0
    %1463 = vmatpush1.msra.mxu0 0.0
    %1464 = vmatprep.subr.mxu0 0.0
    %1465 = vmatpush1.msra.mxu0 0.0
    %1466 = vmatprep.subr.mxu0 0.0
    %1467 = vmatpush1.msra.mxu0 0.0
    %1468 = vmatprep.subr.mxu0 0.0
    %1469 = vmatpush1.msra.mxu0 0.0
    %1470 = vmatprep.subr.mxu0 0.0
    %1471 = vmatpush1.msra.mxu0 0.0
    %1472 = vmatprep.subr.mxu0 0.0
    %1473 = vmatpush1.msra.mxu0 0.0
    %1474 = vmatprep.subr.mxu0 0.0
    %1475 = vmatpush1.msra.mxu0 0.0
    %1476 = vmatprep.subr.mxu0 0.0
    %1477 = vmatpush1.msra.mxu0 0.0
    %1478 = vmatprep.mubr.f32.mxu0 0.0
    %1479 = vmatmul.mubr.f32.gmra.mrb[0].mxu0 %v1409
    %v1480 = vpop.f32.mrb[0].mxu0
    %v1481 = vadd.f32 0.0, %v1480
    %v1482 = vpop.f32.mrb[0].mxu0
    %1483 = vmatprep.mubr.f32.mxu0 0.0
    %1484 = vmatmul.mubr.f32.gmra.mrb[0].mxu0 %v1412
    %v1485 = vpop.f32.mrb[0].mxu0
    %v1486 = vadd.f32 0.0, %v1485
    %v1487 = vpop.f32.mrb[0].mxu0
    %1488 = vdwg.mxu0
    %1489 = vmatprep.subr.mxu0 0.0
    %1490 = vmatpush1.msra.mxu0 %v44
    %1491 = vmatprep.subr.mxu0 0.0
    %1492 = vmatpush1.msra.mxu0 0.0
    %1493 = vmatprep.subr.mxu0 0.0
    %1494 = vmatpush1.msra.mxu0 0.0
    %1495 = vmatprep.subr.mxu0 0.0
    %1496 = vmatpush1.msra.mxu0 0.0
    %1497 = vmatprep.subr.mxu0 0.0
    %1498 = vmatpush1.msra.mxu0 0.0
    %1499 = vmatprep.subr.mxu0 0.0
    %1500 = vmatpush1.msra.mxu0 0.0
    %1501 = vmatprep.subr.mxu0 0.0
    %1502 = vmatpush1.msra.mxu0 0.0
    %1503 = vmatprep.subr.mxu0 0.0
    %1504 = vmatpush1.msra.mxu0 0.0
    %1505 = vmatprep.subr.mxu0 0.0
    %1506 = vmatpush1.msra.mxu0 0.0
    %1507 = vmatprep.subr.mxu0 0.0
    %1508 = vmatpush1.msra.mxu0 0.0
    %1509 = vmatprep.subr.mxu0 0.0
    %1510 = vmatpush1.msra.mxu0 0.0
    %1511 = vmatprep.subr.mxu0 0.0
    %1512 = vmatpush1.msra.mxu0 0.0
    %1513 = vmatprep.subr.mxu0 0.0
    %1514 = vmatpush1.msra.mxu0 0.0
    %1515 = vmatprep.subr.mxu0 0.0
    %1516 = vmatpush1.msra.mxu0 0.0
    %1517 = vmatprep.subr.mxu0 0.0
    %1518 = vmatpush1.msra.mxu0 0.0
    %1519 = vmatprep.subr.mxu0 0.0
    %1520 = vmatpush1.msra.mxu0 0.0
    %1521 = vmatprep.subr.mxu0 0.0
    %1522 = vmatpush1.msra.mxu0 0.0
    %1523 = vmatprep.subr.mxu0 0.0
    %1524 = vmatpush1.msra.mxu0 0.0
    %1525 = vmatprep.subr.mxu0 0.0
    %1526 = vmatpush1.msra.mxu0 0.0
    %1527 = vmatprep.subr.mxu0 0.0
    %1528 = vmatpush1.msra.mxu0 0.0
    %1529 = vmatprep.subr.mxu0 0.0
    %1530 = vmatpush1.msra.mxu0 0.0
    %1531 = vmatprep.subr.mxu0 0.0
    %1532 = vmatpush1.msra.mxu0 0.0
    %1533 = vmatprep.subr.mxu0 0.0
    %1534 = vmatpush1.msra.mxu0 0.0
    %1535 = vmatprep.subr.mxu0 0.0
    %1536 = vmatpush1.msra.mxu0 0.0
    %1537 = vmatprep.subr.mxu0 0.0
    %1538 = vmatpush1.msra.mxu0 0.0
    %1539 = vmatprep.subr.mxu0 0.0
    %1540 = vmatpush1.msra.mxu0 0.0
    %1541 = vmatprep.subr.mxu0 0.0
    %1542 = vmatpush1.msra.mxu0 0.0
    %1543 = vmatprep.subr.mxu0 0.0
    %1544 = vmatpush1.msra.mxu0 0.0
    %1545 = vmatprep.subr.mxu0 0.0
    %1546 = vmatpush1.msra.mxu0 0.0
    %1547 = vmatprep.subr.mxu0 0.0
    %1548 = vmatpush1.msra.mxu0 0.0
    %1549 = vmatprep.subr.mxu0 0.0
    %1550 = vmatpush1.msra.mxu0 0.0
    %1551 = vmatprep.subr.mxu0 0.0
    %1552 = vmatpush1.msra.mxu0 0.0
    %1553 = vmatprep.mubr.f32.mxu0 0.0
    %1554 = vmatmul.mubr.f32.gmra.mrb[0].mxu0 %v146
    %v1555 = vpop.f32.mrb[0].mxu0
    %v1556 = vadd.f32 %v1481, %v1555
    %v1557 = vpop.f32.mrb[0].mxu0
    %1558 = vmatprep.mubr.f32.mxu0 0.0
    %1559 = vmatmul.mubr.f32.gmra.mrb[0].mxu0 %v149
    %v1560 = vpop.f32.mrb[0].mxu0
    %v1561 = vadd.f32 %v1486, %v1560
    %v1562 = vpop.f32.mrb[0].mxu0
    %1563 = vdwg.mxu0
    %v1564 = vlaneseq
    %v1565 = vshrl.u32 %v1564, 7
    %v1566 = vsub.s32 0, %v1565
    %v1567 = vrot.slane %v52, %v1566
    %v1568 = vadd.f32 %v1556, %v1567
    %v1569 = vadd.f32 %v1561, %v1567
    %v1570 = vmax.f32 %v1568, 0.0
    %v1571 = vmax.f32 %v1569, 0.0
    %v1572 = vsel %vm433, %v1570, 0.0
    %1573 = vadd.xlane.f32.xlu0 %v1572
    %v1574 = vpop.xlane.xlu0 %1573
    %v1575 = vsel %vm433, %v1571, 0.0
    %1576 = vadd.xlane.f32.xlu0 %v1575
    %v1577 = vpop.xlane.xlu0 %1576
    %v1578 = vrcp.pop 32.0
    %v1579 = vmul.f32 %v1574, %v1578
    %v1580 = vmul.f32 %v1577, %v1578
    %v1581 = vsub.f32 %v1570, %v1579
    %v1582 = vsub.f32 %v1571, %v1580
    %v1583 = vmul.f32 %v1581, %v1581
    %v1584 = vmul.f32 %v1582, %v1582
    %v1585 = vsel %vm433, %v1583, 0.0
    %1586 = vadd.xlane.f32.xlu0 %v1585
    %v1587 = vpop.xlane.xlu0 %1586
    %v1588 = vsel %vm433, %v1584, 0.0
    %1589 = vadd.xlane.f32.xlu0 %v1588
    %v1590 = vpop.xlane.xlu0 %1589
    %v1591 = vmul.f32 %v1587, %v1578
    %v1592 = vmul.f32 %v1590, %v1578
    %v1593 = vadd.f32 %v1591, 1e-05
    %v1594 = vadd.f32 %v1592, 1e-05
    %v1595 = vrsqrt.pop %v1593
    %v1596 = vrsqrt.pop %v1594
    %v1597 = vmul.f32 %v1581, %v1595
    %v1598 = vmul.f32 %v1582, %v1596
    %v1599 = vlaneseq
    %v1600 = vshrl.u32 %v1599, 7
    %v1601 = vsub.s32 0, %v1600
    %v1602 = vrot.slane %v53, %v1601
    %v1603 = vmul.f32 %v1597, %v1602
    %v1604 = vmul.f32 %v1598, %v1602
    %v1605 = vlaneseq
    %v1606 = vshrl.u32 %v1605, 7
    %v1607 = vsub.s32 0, %v1606
    %v1608 = vrot.slane %v54, %v1607
    %v1609 = vadd.f32 %v1603, %v1608
    %v1610 = vadd.f32 %v1604, %v1608
    %v1611 = vmax.f32 %v1609, 0.0
    %v1612 = vmax.f32 %v1610, 0.0
    %v1614 = vsel %vm323, %v138, 0
    %1616 = vmatprep.subr.mxu0 0.0
    %1617 = vmatpush1.msra.mxu0 %v1611
    %1618 = vmatprep.subr.mxu0 0.0
    %1619 = vmatpush1.msra.mxu0 %v1612
    %1620 = vmatprep.subr.mxu0 0.0
    %1621 = vmatpush1.msra.mxu0 0.0
    %1622 = vmatprep.subr.mxu0 0.0
    %1623 = vmatpush1.msra.mxu0 0.0
    %1624 = vmatprep.subr.mxu0 0.0
    %1625 = vmatpush1.msra.mxu0 0.0
    %1626 = vmatprep.subr.mxu0 0.0
    %1627 = vmatpush1.msra.mxu0 0.0
    %1628 = vmatprep.subr.mxu0 0.0
    %1629 = vmatpush1.msra.mxu0 0.0
    %1630 = vmatprep.subr.mxu0 0.0
    %1631 = vmatpush1.msra.mxu0 0.0
    %1632 = vmatprep.subr.mxu0 0.0
    %1633 = vmatpush1.msra.mxu0 0.0
    %1634 = vmatprep.subr.mxu0 0.0
    %1635 = vmatpush1.msra.mxu0 0.0
    %1636 = vmatprep.subr.mxu0 0.0
    %1637 = vmatpush1.msra.mxu0 0.0
    %1638 = vmatprep.subr.mxu0 0.0
    %1639 = vmatpush1.msra.mxu0 0.0
    %1640 = vmatprep.subr.mxu0 0.0
    %1641 = vmatpush1.msra.mxu0 0.0
    %1642 = vmatprep.subr.mxu0 0.0
    %1643 = vmatpush1.msra.mxu0 0.0
    %1644 = vmatprep.subr.mxu0 0.0
    %1645 = vmatpush1.msra.mxu0 0.0
    %1646 = vmatprep.subr.mxu0 0.0
    %1647 = vmatpush1.msra.mxu0 0.0
    %1648 = vmatprep.subr.mxu0 0.0
    %1649 = vmatpush1.msra.mxu0 0.0
    %1650 = vmatprep.subr.mxu0 0.0
    %1651 = vmatpush1.msra.mxu0 0.0
    %1652 = vmatprep.subr.mxu0 0.0
    %1653 = vmatpush1.msra.mxu0 0.0
    %1654 = vmatprep.subr.mxu0 0.0
    %1655 = vmatpush1.msra.mxu0 0.0
    %1656 = vmatprep.subr.mxu0 0.0
    %1657 = vmatpush1.msra.mxu0 0.0
    %1658 = vmatprep.subr.mxu0 0.0
    %1659 = vmatpush1.msra.mxu0 0.0
    %1660 = vmatprep.subr.mxu0 0.0
    %1661 = vmatpush1.msra.mxu0 0.0
    %1662 = vmatprep.subr.mxu0 0.0
    %1663 = vmatpush1.msra.mxu0 0.0
    %1664 = vmatprep.subr.mxu0 0.0
    %1665 = vmatpush1.msra.mxu0 0.0
    %1666 = vmatprep.subr.mxu0 0.0
    %1667 = vmatpush1.msra.mxu0 0.0
    %1668 = vmatprep.subr.mxu0 0.0
    %1669 = vmatpush1.msra.mxu0 0.0
    %1670 = vmatprep.subr.mxu0 0.0
    %1671 = vmatpush1.msra.mxu0 0.0
    %1672 = vmatprep.subr.mxu0 0.0
    %1673 = vmatpush1.msra.mxu0 0.0
    %1674 = vmatprep.subr.mxu0 0.0
    %1675 = vmatpush1.msra.mxu0 0.0
    %1676 = vmatprep.subr.mxu0 0.0
    %1677 = vmatpush1.msra.mxu0 0.0
    %1678 = vmatprep.subr.mxu0 0.0
    %1679 = vmatpush1.msra.mxu0 0.0
    %1680 = vmatprep.mubr.f32.mxu0 0.0
    %1681 = vmatmul.mubr.f32.gmra.mrb[0].mxu0 %v1614
    %v1682 = vpop.f32.mrb[0].mxu0
    %v1683 = vadd.f32 0.0, %v1682
    %v1684 = vpop.f32.mrb[0].mxu0
    %1685 = vdwg.mxu0
    %v1686 = vrcp.pop %v143
    %v1687 = vmul.f32 %v1683, %v1686
    %v1688 = vld [vmem:[%s4] sm:$0xff]
    %v1689 = vld [vmem:[%s4 + $0x8] sm:$0xff]
    %v1690 = vld [vmem:[%s4 + $0x10] sm:$0xff]
    %v1691 = vld [vmem:[%s4 + $0x18] sm:$0xff]
    %v1693 = vsel %vm433, %v1687, 0
    %1695 = vmatprep.subr.mxu0 0.0
    %1696 = vmatpush1.msra.mxu0 %v1688
    %1697 = vmatprep.subr.mxu0 0.0
    %1698 = vmatpush1.msra.mxu0 %v1689
    %1699 = vmatprep.subr.mxu0 0.0
    %1700 = vmatpush1.msra.mxu0 %v1690
    %1701 = vmatprep.subr.mxu0 0.0
    %1702 = vmatpush1.msra.mxu0 %v1691
    %1703 = vmatprep.subr.mxu0 0.0
    %1704 = vmatpush1.msra.mxu0 0.0
    %1705 = vmatprep.subr.mxu0 0.0
    %1706 = vmatpush1.msra.mxu0 0.0
    %1707 = vmatprep.subr.mxu0 0.0
    %1708 = vmatpush1.msra.mxu0 0.0
    %1709 = vmatprep.subr.mxu0 0.0
    %1710 = vmatpush1.msra.mxu0 0.0
    %1711 = vmatprep.subr.mxu0 0.0
    %1712 = vmatpush1.msra.mxu0 0.0
    %1713 = vmatprep.subr.mxu0 0.0
    %1714 = vmatpush1.msra.mxu0 0.0
    %1715 = vmatprep.subr.mxu0 0.0
    %1716 = vmatpush1.msra.mxu0 0.0
    %1717 = vmatprep.subr.mxu0 0.0
    %1718 = vmatpush1.msra.mxu0 0.0
    %1719 = vmatprep.subr.mxu0 0.0
    %1720 = vmatpush1.msra.mxu0 0.0
    %1721 = vmatprep.subr.mxu0 0.0
    %1722 = vmatpush1.msra.mxu0 0.0
    %1723 = vmatprep.subr.mxu0 0.0
    %1724 = vmatpush1.msra.mxu0 0.0
    %1725 = vmatprep.subr.mxu0 0.0
    %1726 = vmatpush1.msra.mxu0 0.0
    %1727 = vmatprep.subr.mxu0 0.0
    %1728 = vmatpush1.msra.mxu0 0.0
    %1729 = vmatprep.subr.mxu0 0.0
    %1730 = vmatpush1.msra.mxu0 0.0
    %1731 = vmatprep.subr.mxu0 0.0
    %1732 = vmatpush1.msra.mxu0 0.0
    %1733 = vmatprep.subr.mxu0 0.0
    %1734 = vmatpush1.msra.mxu0 0.0
    %1735 = vmatprep.subr.mxu0 0.0
    %1736 = vmatpush1.msra.mxu0 0.0
    %1737 = vmatprep.subr.mxu0 0.0
    %1738 = vmatpush1.msra.mxu0 0.0
    %1739 = vmatprep.subr.mxu0 0.0
    %1740 = vmatpush1.msra.mxu0 0.0
    %1741 = vmatprep.subr.mxu0 0.0
    %1742 = vmatpush1.msra.mxu0 0.0
    %1743 = vmatprep.subr.mxu0 0.0
    %1744 = vmatpush1.msra.mxu0 0.0
    %1745 = vmatprep.subr.mxu0 0.0
    %1746 = vmatpush1.msra.mxu0 0.0
    %1747 = vmatprep.subr.mxu0 0.0
    %1748 = vmatpush1.msra.mxu0 0.0
    %1749 = vmatprep.subr.mxu0 0.0
    %1750 = vmatpush1.msra.mxu0 0.0
    %1751 = vmatprep.subr.mxu0 0.0
    %1752 = vmatpush1.msra.mxu0 0.0
    %1753 = vmatprep.subr.mxu0 0.0
    %1754 = vmatpush1.msra.mxu0 0.0
    %1755 = vmatprep.subr.mxu0 0.0
    %1756 = vmatpush1.msra.mxu0 0.0
    %1757 = vmatprep.subr.mxu0 0.0
    %1758 = vmatpush1.msra.mxu0 0.0
    %1759 = vmatprep.mubr.f32.mxu0 0.0
    %1760 = vmatmul.mubr.f32.gmra.mrb[0].mxu0 %v1693
    %v1761 = vpop.f32.mrb[0].mxu0
    %v1762 = vadd.f32 0.0, %v1761
    %v1763 = vpop.f32.mrb[0].mxu0
    %1764 = vdwg.mxu0
    %1765 = vst [vmem:[#allocation2] sm:$0x3] %v1762
    // Predicated region
    $region22: #{hqsc_dmpnn_forward.1} parent=1 // pred_check
      _
    $region23: #{hqsc_dmpnn_forward.1} parent=1 // pred_check_branch
      %1767 = sbr.rel (0) target = $region25
    $region24: #{hqsc_dmpnn_forward.1} parent=1 // pred_region
      %s1769 = ssub.s32 32, 32
      %1770 = vsyncadd [#allocation3], %s1769
      %s1772 = sshll.u32 [#allocation2], 4
      %s1773 = int_to_ptr.vmem [resolvable:$true] %s1772
      %1775 = dma.vmem_to_hbm [thread:$0]  %s1773, 32, %s5, [#allocation3]
    $region25: #{hqsc_dmpnn_forward.1} parent=1 // pred_fallthru
      _
    // Predicated region
    $region26: #{hqsc_dmpnn_forward.1} parent=1 // pred_check
      _
    $region27: #{hqsc_dmpnn_forward.1} parent=1 // pred_check_branch
      %1777 = sbr.rel (0) target = $region29
    $region28: #{hqsc_dmpnn_forward.1} parent=1 // pred_region
      %1778 = dma.done [#allocation3], 32
    $region29: #{hqsc_dmpnn_forward.1} parent=1 // pred_fallthru
      _
    %1779 = vsyncpa [#allocation3], 1

</llo_original>
